<compile_context>
chip_gen: v7x
topology: tpu7x:2x2x1
jax: 0.10.0
libtpu: 0.0.40
codegen_flags: <defaults>
</compile_context>

<pallas_src>
import functools

import jax
import jax.numpy as jnp
from jax import lax
from jax.experimental import pallas as pl
from jax.experimental.pallas import tpu as pltpu


def _bottleneck_kernel(x_ref, w1_ref, wdw_ref, w2_ref, pmid_ref, b3_ref,
                       o_ref, mid_pad_ref, *, H, W, Hout, Wout, s, connect):
    # x_ref:       (1, H, W, Cin)       bf16  NHWC block, one batch element
    # w1_ref:      (Cin, Cmid)          bf16  (BN1 scale folded in)
    # wdw_ref:     (9, 1, Cmid)         f32   depthwise taps (BN2 scale folded)
    # w2_ref:      (Cmid, oup)          bf16  (BN3 scale folded in)
    # pmid_ref:    (4, Cmid)            f32   rows = [bias1, alpha1, bias2, alpha2]
    # b3_ref:      (1, oup)             f32
    # o_ref:       (1, oup, Hout*Wout)  f32   channel-major -> lane-dense stores
    # mid_pad_ref: (H+2, W+2, Cmid)     f32   VMEM scratch (zero-padded dw input)
    cin = x_ref.shape[3]
    cmid = w1_ref.shape[1]
    m_in = H * W
    m_out = Hout * Wout

    x = x_ref[0].reshape(m_in, cin)                      # (M, Cin) bf16
    pmid = pmid_ref[...]                                 # (4, Cmid) f32

    # ---- 1x1 expansion conv + BN bias + PReLU : one bf16 MXU matmul -------
    mid = jnp.dot(x, w1_ref[...], preferred_element_type=jnp.float32)
    mid = mid + pmid[0:1, :]
    mid = jnp.where(mid > 0, mid, mid * pmid[1:2, :])    # (M, Cmid) f32

    # ---- 3x3 depthwise conv (stride s, pad 1) + BN bias + PReLU -----------
    # Zero-padded intermediate kept in a VMEM scratch; 9 shifted elementwise
    # MACs on the VPU (channels on lanes: lane-dense at real widths 64..512).
    mid_pad_ref[...] = jnp.zeros((H + 2, W + 2, cmid), jnp.float32)
    mid_pad_ref[1:H + 1, 1:W + 1, :] = mid.reshape(H, W, cmid)
    mp = mid_pad_ref[...]                                # (H+2, W+2, Cmid)
    wdw = wdw_ref[...]                                   # (9, 1, Cmid)
    acc = jnp.zeros((Hout, Wout, cmid), jnp.float32)
    for kh in range(3):
        for kw in range(3):
            patch = lax.slice(
                mp, (kh, kw, 0),
                (kh + s * (Hout - 1) + 1, kw + s * (Wout - 1) + 1, cmid),
                (s, s, 1))                               # (Hout, Wout, Cmid)
            acc = acc + patch * wdw[3 * kh + kw]
    acc = acc + pmid[2:3, :]
    acc = jnp.where(acc > 0, acc, acc * pmid[3:4, :])

    # ---- 1x1 projection conv + BN bias (+ fused residual) -----------------
    y = jnp.dot(acc.reshape(m_out, cmid).astype(jnp.bfloat16), w2_ref[...],
                preferred_element_type=jnp.float32)      # (Mout, oup) f32
    y = y + b3_ref[...]
    if connect:                                          # stride==1, inp==oup
        y = y + x.astype(jnp.float32)

    # Channel-major store: lane dim = Hout*Wout -> unmasked vst; output is
    # already NCHW so the wrapper only reshapes.
    o_ref[0] = jnp.transpose(y).astype(o_ref.dtype)


def bottleneck_forward(x_nchw, w1, bn1, alpha1, wdw, bn2, alpha2, w2, bn3,
                       *, stride, eps=1e-5):
    """Bottleneck forward (inference-mode BN, per-channel PReLU).

    x_nchw: (N, Cin, H, W);  w1: (Cmid, Cin, 1, 1);  wdw: (Cmid, 1, 3, 3);
    w2: (oup, Cmid, 1, 1);   bn* = (gamma, beta, running_mean, running_var).
    """
    n, cin, h, w = x_nchw.shape
    cmid = w1.shape[0]
    oup = w2.shape[0]
    s = stride
    h_out = (h + 2 - 3) // s + 1
    w_out = (w + 2 - 3) // s + 1
    m_out = h_out * w_out
    connect = (s == 1 and cin == oup)

    def fold(bn):
        gamma, beta, mean, var = (p.astype(jnp.float32) for p in bn)
        scale = gamma / jnp.sqrt(var + eps)
        return scale, beta - mean * scale

    sc1, b1 = fold(bn1)
    sc2, b2 = fold(bn2)
    sc3, b3 = fold(bn3)

    # Fold BN scales into the conv weights; bf16 for the MXU matmuls.
    w1_k = (w1.reshape(cmid, cin).astype(jnp.float32) * sc1[:, None]).T
    w1_k = w1_k.astype(jnp.bfloat16)                       # (Cin, Cmid)
    wdw_k = (wdw.reshape(cmid, 9).astype(jnp.float32) * sc2[:, None]).T
    wdw_k = wdw_k.reshape(9, 1, cmid)                      # (9, 1, Cmid) f32
    w2_k = (w2.reshape(oup, cmid).astype(jnp.float32) * sc3[:, None]).T
    w2_k = w2_k.astype(jnp.bfloat16)                       # (Cmid, oup)

    pmid = jnp.stack([b1, alpha1.astype(jnp.float32),
                      b2, alpha2.astype(jnp.float32)])     # (4, Cmid)
    b3 = b3.reshape(1, oup)

    # NCHW -> NHWC, bf16 activations into the kernel.
    x = jnp.transpose(x_nchw, (0, 2, 3, 1)).astype(jnp.bfloat16)

    kernel = functools.partial(_bottleneck_kernel, H=h, W=w, Hout=h_out,
                               Wout=w_out, s=s, connect=connect)

    out = pl.pallas_call(
        kernel,
        out_shape=jax.ShapeDtypeStruct((n, oup, m_out), jnp.float32),
        grid=(n,),
        in_specs=[
            pl.BlockSpec((1, h, w, cin), lambda i: (i, 0, 0, 0)),
            pl.BlockSpec((cin, cmid), lambda i: (0, 0)),
            pl.BlockSpec((9, 1, cmid), lambda i: (0, 0, 0)),
            pl.BlockSpec((cmid, oup), lambda i: (0, 0)),
            pl.BlockSpec((4, cmid), lambda i: (0, 0)),
            pl.BlockSpec((1, oup), lambda i: (0, 0)),
        ],
        out_specs=pl.BlockSpec((1, oup, m_out), lambda i: (i, 0, 0)),
        scratch_shapes=[pltpu.VMEM((h + 2, w + 2, cmid), jnp.float32)],
        compiler_params=pltpu.CompilerParams(
            dimension_semantics=("parallel",),
            vmem_limit_bytes=32 * 1024 * 1024),
    )(x, w1_k, wdw_k, w2_k, pmid, b3)

    # Output is already channel-major (NCHW flattened): reshape only.
    return out.reshape(n, oup, h_out, w_out)


# ----------------------------- reference ----------------------------------
def _bn_ref(y, bn, eps):
    gamma, beta, mean, var = (p.astype(jnp.float32) for p in bn)
    sc = gamma / jnp.sqrt(var + eps)
    return y * sc[None, :, None, None] + (beta - mean * sc)[None, :, None, None]


def _prelu_ref(y, a):
    return jnp.where(y > 0, y, y * a[None, :, None, None])


def bottleneck_reference(x, w1, bn1, a1, wdw, bn2, a2, w2, bn3, *, stride,
                         eps=1e-5):
    x = x.astype(jnp.float32)
    y = lax.conv_general_dilated(x, w1.astype(jnp.float32), (1, 1),
                                 ((0, 0), (0, 0)),
                                 dimension_numbers=("NCHW", "OIHW", "NCHW"))
    y = _prelu_ref(_bn_ref(y, bn1, eps), a1)
    cmid = y.shape[1]
    y = lax.conv_general_dilated(y, wdw.astype(jnp.float32), (stride, stride),
                                 ((1, 1), (1, 1)),
                                 dimension_numbers=("NCHW", "OIHW", "NCHW"),
                                 feature_group_count=cmid)
    y = _prelu_ref(_bn_ref(y, bn2, eps), a2)
    y = lax.conv_general_dilated(y, w2.astype(jnp.float32), (1, 1),
                                 ((0, 0), (0, 0)),
                                 dimension_numbers=("NCHW", "OIHW", "NCHW"))
    y = _bn_ref(y, bn3, eps)
    if stride == 1 and x.shape[1] == w2.shape[0]:
        y = x + y
    return y


def _make_bottleneck_params(key, inp, oup, expansion):
    cmid = inp * expansion
    ks = jax.random.split(key, 8)

    def bn_params(k, c):
        k0, k1, k2, k3 = jax.random.split(k, 4)
        return (1.0 + 0.1 * jax.random.normal(k0, (c,), jnp.float32),
                0.1 * jax.random.normal(k1, (c,), jnp.float32),
                0.1 * jax.random.normal(k2, (c,), jnp.float32),
                jnp.abs(jax.random.normal(k3, (c,), jnp.float32)) + 0.5)

    w1 = 0.1 * jax.random.normal(ks[0], (cmid, inp, 1, 1), jnp.float32)
    wdw = 0.1 * jax.random.normal(ks[1], (cmid, 1, 3, 3), jnp.float32)
    w2 = 0.1 * jax.random.normal(ks[2], (oup, cmid, 1, 1), jnp.float32)
    bn1 = bn_params(ks[3], cmid)
    bn2 = bn_params(ks[4], cmid)
    bn3 = bn_params(ks[5], oup)
    a1 = 0.25 + 0.05 * jax.random.normal(ks[6], (cmid,), jnp.float32)
    a2 = 0.25 + 0.05 * jax.random.normal(ks[7], (cmid,), jnp.float32)
    return w1, bn1, a1, wdw, bn2, a2, w2, bn3


if __name__ == "__main__":
    key = jax.random.PRNGKey(0)
    kx, kp1, kp2 = jax.random.split(key, 3)

    n, inp, h, w, expansion = 2, 4, 16, 16, 2
    x = jax.random.normal(kx, (n, inp, h, w), jnp.float32)

    # Case 1: stride=1, inp == oup -> residual ("connect") branch.
    oup1 = 4
    params1 = _make_bottleneck_params(kp1, inp, oup1, expansion)
    out1 = jax.block_until_ready(bottleneck_forward(x, *params1, stride=1))
    ref1 = bottleneck_reference(x, *params1, stride=1)
    assert out1.shape == (n, oup1, h, w)
    assert jnp.allclose(out1, ref1, atol=3e-2, rtol=3e-2), (
        float(jnp.max(jnp.abs(out1 - ref1))))

    # Case 2: stride=2, inp != oup -> plain conv branch (no residual).
    oup2 = 8
    params2 = _make_bottleneck_params(kp2, inp, oup2, expansion)
    out2 = jax.block_until_ready(bottleneck_forward(x, *params2, stride=2))
    ref2 = bottleneck_reference(x, *params2, stride=2)
    assert out2.shape == (n, oup2, h // 2, w // 2)
    assert jnp.allclose(out2, ref2, atol=3e-2, rtol=3e-2), (
        float(jnp.max(jnp.abs(out2 - ref2))))

    print("KERNEL_OK")
</pallas_src>

<mosaic_0001>
module attributes {stable_mosaic.version = 11 : i64} {
  func.func @_bottleneck_kernel(%arg0: i32, %arg1: memref<1x16x16x4xbf16, #tpu.memory_space<vmem>>, %arg2: memref<4x8xbf16, #tpu.memory_space<vmem>>, %arg3: memref<9x1x8xf32, #tpu.memory_space<vmem>>, %arg4: memref<8x4xbf16, #tpu.memory_space<vmem>>, %arg5: memref<4x8xf32, #tpu.memory_space<vmem>>, %arg6: memref<1x4xf32, #tpu.memory_space<vmem>>, %arg7: memref<1x4x256xf32, #tpu.memory_space<vmem>>, %arg8: memref<18x18x8xf32, #tpu.memory_space<vmem>>) attributes {dimension_semantics = [#tpu.dimension_semantics<parallel>], iteration_bounds = array<i64: 2>, scalar_prefetch = 0 : i64, scratch_operands = 1 : i64, tpu.core_type = #tpu.core_type<tc>, window_params = [{transform_indices = @transform_0, window_bounds = array<i64: 1, 16, 16, 4>}, {pipeline_mode = #tpu.pipeline_mode<synchronous>, transform_indices = @transform_1, window_bounds = array<i64: 4, 8>}, {pipeline_mode = #tpu.pipeline_mode<synchronous>, transform_indices = @transform_2, window_bounds = array<i64: 9, 1, 8>}, {pipeline_mode = #tpu.pipeline_mode<synchronous>, transform_indices = @transform_3, window_bounds = array<i64: 8, 4>}, {pipeline_mode = #tpu.pipeline_mode<synchronous>, transform_indices = @transform_4, window_bounds = array<i64: 4, 8>}, {pipeline_mode = #tpu.pipeline_mode<synchronous>, transform_indices = @transform_5, window_bounds = array<i64: 1, 4>}, {transform_indices = @transform_6, window_bounds = array<i64: 1, 4, 256>}]} {
    %c0 = arith.constant 0 : index
    %c0_0 = arith.constant 0 : index
    %c0_1 = arith.constant 0 : index
    %c0_2 = arith.constant 0 : index
    %0 = vector.load %arg1[%c0, %c0_0, %c0_1, %c0_2] : memref<1x16x16x4xbf16, #tpu.memory_space<vmem>>, vector<1x16x16x4xbf16>
    %1 = vector.shape_cast %0 : vector<1x16x16x4xbf16> to vector<16x16x4xbf16>
    %2 = vector.shape_cast %1 : vector<16x16x4xbf16> to vector<256x4xbf16>
    %c0_3 = arith.constant 0 : index
    %c0_4 = arith.constant 0 : index
    %3 = vector.load %arg5[%c0_3, %c0_4] : memref<4x8xf32, #tpu.memory_space<vmem>>, vector<4x8xf32>
    %c0_5 = arith.constant 0 : index
    %c0_6 = arith.constant 0 : index
    %4 = vector.load %arg2[%c0_5, %c0_6] : memref<4x8xbf16, #tpu.memory_space<vmem>>, vector<4x8xbf16>
    %cst = arith.constant dense<0.000000e+00> : vector<256x8xf32>
    %5 = tpu.matmul %2, %4, %cst {dimension_numbers = #tpu.dot_dimension_numbers<[1], [0], [0], [1], [0, 0, 1, 1], [], []>} : vector<256x4xbf16>, vector<4x8xbf16>, vector<256x8xf32> -> vector<256x8xf32>
    %6 = vector.extract_strided_slice %3 {offsets = [0, 0], sizes = [1, 8], strides = [1, 1]} : vector<4x8xf32> to vector<1x8xf32>
    %7 = vector.broadcast %6 : vector<1x8xf32> to vector<256x8xf32>
    %8 = arith.addf %5, %7 : vector<256x8xf32>
    %cst_7 = arith.constant 0.000000e+00 : f32
    %9 = vector.broadcast %cst_7 : f32 to vector<256x8xf32>
    %10 = arith.cmpf ogt, %8, %9 : vector<256x8xf32>
    %11 = vector.extract_strided_slice %3 {offsets = [1, 0], sizes = [1, 8], strides = [1, 1]} : vector<4x8xf32> to vector<1x8xf32>
    %12 = vector.broadcast %11 : vector<1x8xf32> to vector<256x8xf32>
    %13 = arith.mulf %8, %12 : vector<256x8xf32>
    %14 = arith.select %10, %8, %13 : vector<256x8xi1>, vector<256x8xf32>
    %cst_8 = arith.constant 0.000000e+00 : f32
    %15 = vector.broadcast %cst_8 : f32 to vector<18x18x8xf32>
    %c0_9 = arith.constant 0 : index
    %c0_10 = arith.constant 0 : index
    %c0_11 = arith.constant 0 : index
    %16 = vector.load %arg8[%c0_9, %c0_10, %c0_11] : memref<18x18x8xf32, #tpu.memory_space<vmem>>, vector<18x18x8xf32>
    tpu.vector_store %arg8[%c0_9, %c0_10, %c0_11], %15 {strides = array<i32>} : memref<18x18x8xf32, #tpu.memory_space<vmem>>, vector<18x18x8xf32>,
    %17 = vector.shape_cast %14 : vector<256x8xf32> to vector<16x16x8xf32>
    %c1 = arith.constant 1 : index
    %c1_12 = arith.constant 1 : index
    %c0_13 = arith.constant 0 : index
    %18 = vector.load %arg8[%c1, %c1_12, %c0_13] : memref<18x18x8xf32, #tpu.memory_space<vmem>>, vector<16x16x8xf32>
    tpu.vector_store %arg8[%c1, %c1_12, %c0_13], %17 {strides = array<i32>} : memref<18x18x8xf32, #tpu.memory_space<vmem>>, vector<16x16x8xf32>,
    %c0_14 = arith.constant 0 : index
    %c0_15 = arith.constant 0 : index
    %c0_16 = arith.constant 0 : index
    %19 = vector.load %arg8[%c0_14, %c0_15, %c0_16] : memref<18x18x8xf32, #tpu.memory_space<vmem>>, vector<18x18x8xf32>
    %c0_17 = arith.constant 0 : index
    %c0_18 = arith.constant 0 : index
    %c0_19 = arith.constant 0 : index
    %20 = vector.load %arg3[%c0_17, %c0_18, %c0_19] : memref<9x1x8xf32, #tpu.memory_space<vmem>>, vector<9x1x8xf32>
    %cst_20 = arith.constant 0.000000e+00 : f32
    %21 = vector.broadcast %cst_20 : f32 to vector<16x16x8xf32>
    %22 = vector.extract_strided_slice %19 {offsets = [0, 0, 0], sizes = [16, 16, 8], strides = [1, 1, 1]} : vector<18x18x8xf32> to vector<16x16x8xf32>
    %23 = vector.extract_strided_slice %20 {offsets = [0, 0, 0], sizes = [1, 1, 8], strides = [1, 1, 1]} : vector<9x1x8xf32> to vector<1x1x8xf32>
    %24 = vector.shape_cast %23 : vector<1x1x8xf32> to vector<1x8xf32>
    %25 = vector.shape_cast %24 : vector<1x8xf32> to vector<1x1x8xf32>
    %26 = vector.broadcast %25 : vector<1x1x8xf32> to vector<16x16x8xf32>
    %27 = arith.mulf %22, %26 : vector<16x16x8xf32>
    %28 = arith.addf %21, %27 : vector<16x16x8xf32>
    %29 = vector.extract_strided_slice %19 {offsets = [0, 1, 0], sizes = [16, 16, 8], strides = [1, 1, 1]} : vector<18x18x8xf32> to vector<16x16x8xf32>
    %30 = vector.extract_strided_slice %20 {offsets = [1, 0, 0], sizes = [1, 1, 8], strides = [1, 1, 1]} : vector<9x1x8xf32> to vector<1x1x8xf32>
    %31 = vector.shape_cast %30 : vector<1x1x8xf32> to vector<1x8xf32>
    %32 = vector.shape_cast %31 : vector<1x8xf32> to vector<1x1x8xf32>
    %33 = vector.broadcast %32 : vector<1x1x8xf32> to vector<16x16x8xf32>
    %34 = arith.mulf %29, %33 : vector<16x16x8xf32>
    %35 = arith.addf %28, %34 : vector<16x16x8xf32>
    %36 = vector.extract_strided_slice %19 {offsets = [0, 2, 0], sizes = [16, 16, 8], strides = [1, 1, 1]} : vector<18x18x8xf32> to vector<16x16x8xf32>
    %37 = vector.extract_strided_slice %20 {offsets = [2, 0, 0], sizes = [1, 1, 8], strides = [1, 1, 1]} : vector<9x1x8xf32> to vector<1x1x8xf32>
    %38 = vector.shape_cast %37 : vector<1x1x8xf32> to vector<1x8xf32>
    %39 = vector.shape_cast %38 : vector<1x8xf32> to vector<1x1x8xf32>
    %40 = vector.broadcast %39 : vector<1x1x8xf32> to vector<16x16x8xf32>
    %41 = arith.mulf %36, %40 : vector<16x16x8xf32>
    %42 = arith.addf %35, %41 : vector<16x16x8xf32>
    %43 = vector.extract_strided_slice %19 {offsets = [1, 0, 0], sizes = [16, 16, 8], strides = [1, 1, 1]} : vector<18x18x8xf32> to vector<16x16x8xf32>
    %44 = vector.extract_strided_slice %20 {offsets = [3, 0, 0], sizes = [1, 1, 8], strides = [1, 1, 1]} : vector<9x1x8xf32> to vector<1x1x8xf32>
    %45 = vector.shape_cast %44 : vector<1x1x8xf32> to vector<1x8xf32>
    %46 = vector.shape_cast %45 : vector<1x8xf32> to vector<1x1x8xf32>
    %47 = vector.broadcast %46 : vector<1x1x8xf32> to vector<16x16x8xf32>
    %48 = arith.mulf %43, %47 : vector<16x16x8xf32>
    %49 = arith.addf %42, %48 : vector<16x16x8xf32>
    %50 = vector.extract_strided_slice %19 {offsets = [1, 1, 0], sizes = [16, 16, 8], strides = [1, 1, 1]} : vector<18x18x8xf32> to vector<16x16x8xf32>
    %51 = vector.extract_strided_slice %20 {offsets = [4, 0, 0], sizes = [1, 1, 8], strides = [1, 1, 1]} : vector<9x1x8xf32> to vector<1x1x8xf32>
    %52 = vector.shape_cast %51 : vector<1x1x8xf32> to vector<1x8xf32>
    %53 = vector.shape_cast %52 : vector<1x8xf32> to vector<1x1x8xf32>
    %54 = vector.broadcast %53 : vector<1x1x8xf32> to vector<16x16x8xf32>
    %55 = arith.mulf %50, %54 : vector<16x16x8xf32>
    %56 = arith.addf %49, %55 : vector<16x16x8xf32>
    %57 = vector.extract_strided_slice %19 {offsets = [1, 2, 0], sizes = [16, 16, 8], strides = [1, 1, 1]} : vector<18x18x8xf32> to vector<16x16x8xf32>
    %58 = vector.extract_strided_slice %20 {offsets = [5, 0, 0], sizes = [1, 1, 8], strides = [1, 1, 1]} : vector<9x1x8xf32> to vector<1x1x8xf32>
    %59 = vector.shape_cast %58 : vector<1x1x8xf32> to vector<1x8xf32>
    %60 = vector.shape_cast %59 : vector<1x8xf32> to vector<1x1x8xf32>
    %61 = vector.broadcast %60 : vector<1x1x8xf32> to vector<16x16x8xf32>
    %62 = arith.mulf %57, %61 : vector<16x16x8xf32>
    %63 = arith.addf %56, %62 : vector<16x16x8xf32>
    %64 = vector.extract_strided_slice %19 {offsets = [2, 0, 0], sizes = [16, 16, 8], strides = [1, 1, 1]} : vector<18x18x8xf32> to vector<16x16x8xf32>
    %65 = vector.extract_strided_slice %20 {offsets = [6, 0, 0], sizes = [1, 1, 8], strides = [1, 1, 1]} : vector<9x1x8xf32> to vector<1x1x8xf32>
    %66 = vector.shape_cast %65 : vector<1x1x8xf32> to vector<1x8xf32>
    %67 = vector.shape_cast %66 : vector<1x8xf32> to vector<1x1x8xf32>
    %68 = vector.broadcast %67 : vector<1x1x8xf32> to vector<16x16x8xf32>
    %69 = arith.mulf %64, %68 : vector<16x16x8xf32>
    %70 = arith.addf %63, %69 : vector<16x16x8xf32>
    %71 = vector.extract_strided_slice %19 {offsets = [2, 1, 0], sizes = [16, 16, 8], strides = [1, 1, 1]} : vector<18x18x8xf32> to vector<16x16x8xf32>
    %72 = vector.extract_strided_slice %20 {offsets = [7, 0, 0], sizes = [1, 1, 8], strides = [1, 1, 1]} : vector<9x1x8xf32> to vector<1x1x8xf32>
    %73 = vector.shape_cast %72 : vector<1x1x8xf32> to vector<1x8xf32>
    %74 = vector.shape_cast %73 : vector<1x8xf32> to vector<1x1x8xf32>
    %75 = vector.broadcast %74 : vector<1x1x8xf32> to vector<16x16x8xf32>
    %76 = arith.mulf %71, %75 : vector<16x16x8xf32>
    %77 = arith.addf %70, %76 : vector<16x16x8xf32>
    %78 = vector.extract_strided_slice %19 {offsets = [2, 2, 0], sizes = [16, 16, 8], strides = [1, 1, 1]} : vector<18x18x8xf32> to vector<16x16x8xf32>
    %79 = vector.extract_strided_slice %20 {offsets = [8, 0, 0], sizes = [1, 1, 8], strides = [1, 1, 1]} : vector<9x1x8xf32> to vector<1x1x8xf32>
    %80 = vector.shape_cast %79 : vector<1x1x8xf32> to vector<1x8xf32>
    %81 = vector.shape_cast %80 : vector<1x8xf32> to vector<1x1x8xf32>
    %82 = vector.broadcast %81 : vector<1x1x8xf32> to vector<16x16x8xf32>
    %83 = arith.mulf %78, %82 : vector<16x16x8xf32>
    %84 = arith.addf %77, %83 : vector<16x16x8xf32>
    %85 = vector.extract_strided_slice %3 {offsets = [2, 0], sizes = [1, 8], strides = [1, 1]} : vector<4x8xf32> to vector<1x8xf32>
    %86 = vector.shape_cast %85 : vector<1x8xf32> to vector<1x1x8xf32>
    %87 = vector.broadcast %86 : vector<1x1x8xf32> to vector<16x16x8xf32>
    %88 = arith.addf %84, %87 : vector<16x16x8xf32>
    %cst_21 = arith.constant 0.000000e+00 : f32
    %89 = vector.broadcast %cst_21 : f32 to vector<16x16x8xf32>
    %90 = arith.cmpf ogt, %88, %89 : vector<16x16x8xf32>
    %91 = vector.extract_strided_slice %3 {offsets = [3, 0], sizes = [1, 8], strides = [1, 1]} : vector<4x8xf32> to vector<1x8xf32>
    %92 = vector.shape_cast %91 : vector<1x8xf32> to vector<1x1x8xf32>
    %93 = vector.broadcast %92 : vector<1x1x8xf32> to vector<16x16x8xf32>
    %94 = arith.mulf %88, %93 : vector<16x16x8xf32>
    %95 = arith.select %90, %88, %94 : vector<16x16x8xi1>, vector<16x16x8xf32>
    %96 = vector.shape_cast %95 : vector<16x16x8xf32> to vector<256x8xf32>
    %97 = arith.truncf %96 : vector<256x8xf32> to vector<256x8xbf16>
    %c0_22 = arith.constant 0 : index
    %c0_23 = arith.constant 0 : index
    %98 = vector.load %arg4[%c0_22, %c0_23] : memref<8x4xbf16, #tpu.memory_space<vmem>>, vector<8x4xbf16>
    %cst_24 = arith.constant dense<0.000000e+00> : vector<256x4xf32>
    %99 = tpu.matmul %97, %98, %cst_24 {dimension_numbers = #tpu.dot_dimension_numbers<[1], [0], [0], [1], [0, 0, 1, 1], [], []>} : vector<256x8xbf16>, vector<8x4xbf16>, vector<256x4xf32> -> vector<256x4xf32>
    %c0_25 = arith.constant 0 : index
    %c0_26 = arith.constant 0 : index
    %100 = vector.load %arg6[%c0_25, %c0_26] : memref<1x4xf32, #tpu.memory_space<vmem>>, vector<1x4xf32>
    %101 = vector.broadcast %100 : vector<1x4xf32> to vector<256x4xf32>
    %102 = arith.addf %99, %101 : vector<256x4xf32>
    %103 = arith.extf %2 : vector<256x4xbf16> to vector<256x4xf32>
    %104 = arith.addf %102, %103 : vector<256x4xf32>
    %105 = tpu.transpose %104, [1, 0] : vector<256x4xf32> -> vector<4x256xf32>
    %c0_27 = arith.constant 0 : index
    %c0_28 = arith.constant 0 : index
    %c0_29 = arith.constant 0 : index
    %106 = vector.load %arg7[%c0_27, %c0_28, %c0_29] : memref<1x4x256xf32, #tpu.memory_space<vmem>>, vector<1x4x256xf32>
    %107 = vector.shape_cast %106 : vector<1x4x256xf32> to vector<4x256xf32>
    %108 = vector.shape_cast %105 : vector<4x256xf32> to vector<1x4x256xf32>
    tpu.vector_store %arg7[%c0_27, %c0_28, %c0_29], %108 {strides = array<i32>} : memref<1x4x256xf32, #tpu.memory_space<vmem>>, vector<1x4x256xf32>,
    return
  }
  func.func @transform_0(%arg0: i32) -> (i32, i32, i32, i32) {
    %c0_i32 = arith.constant 0 : i32
    %c0_i32_0 = arith.constant 0 : i32
    %c0_i32_1 = arith.constant 0 : i32
    %c0_i32_2 = arith.constant 0 : i32
    return %arg0, %c0_i32, %c0_i32_0, %c0_i32_1 : i32, i32, i32, i32
  }
  func.func @transform_1(%arg0: i32) -> (i32, i32) {
    %c0_i32 = arith.constant 0 : i32
    %c0_i32_0 = arith.constant 0 : i32
    %c0_i32_1 = arith.constant 0 : i32
    return %c0_i32, %c0_i32_0 : i32, i32
  }
  func.func @transform_2(%arg0: i32) -> (i32, i32, i32) {
    %c0_i32 = arith.constant 0 : i32
    %c0_i32_0 = arith.constant 0 : i32
    %c0_i32_1 = arith.constant 0 : i32
    %c0_i32_2 = arith.constant 0 : i32
    return %c0_i32, %c0_i32_0, %c0_i32_1 : i32, i32, i32
  }
  func.func @transform_3(%arg0: i32) -> (i32, i32) {
    %c0_i32 = arith.constant 0 : i32
    %c0_i32_0 = arith.constant 0 : i32
    %c0_i32_1 = arith.constant 0 : i32
    return %c0_i32, %c0_i32_0 : i32, i32
  }
  func.func @transform_4(%arg0: i32) -> (i32, i32) {
    %c0_i32 = arith.constant 0 : i32
    %c0_i32_0 = arith.constant 0 : i32
    %c0_i32_1 = arith.constant 0 : i32
    return %c0_i32, %c0_i32_0 : i32, i32
  }
  func.func @transform_5(%arg0: i32) -> (i32, i32) {
    %c0_i32 = arith.constant 0 : i32
    %c0_i32_0 = arith.constant 0 : i32
    %c0_i32_1 = arith.constant 0 : i32
    return %c0_i32, %c0_i32_0 : i32, i32
  }
  func.func @transform_6(%arg0: i32) -> (i32, i32, i32) {
    %c0_i32 = arith.constant 0 : i32
    %c0_i32_0 = arith.constant 0 : i32
    %c0_i32_1 = arith.constant 0 : i32
    return %arg0, %c0_i32, %c0_i32_0 : i32, i32, i32
  }
}

</mosaic_0001>

<llo_original>
// kernel: tpu_custom_call.1
$region0: #{tpu_custom_call.1}
  #allocation0 [shape = 'u32[]', space=smem, size = 0x4, offset = 0x4, fixed_abs, tag = 'smem constant byte address 0x4 - core index']
  #allocation1 [shape = 'u32[144,128]{1,0:T(1,128)}', space=vmem, size = 0x12000, scoped, tag = 'internal scratch']
  #allocation2 [shape = 'f32[18,18,8]{2,1,0:T(8,128)}', space=vmem, size = 0x36000, scoped, tag = 'scratch operand']
  %s0 = inlined_call_operand.vmem [shape: bf16[2,16,16,4], index: 0, kind: input, shape index: {}]
  %s1 = inlined_call_operand.vmem [shape: bf16[4,8], index: 1, kind: input, shape index: {}]
  %s2 = inlined_call_operand.vmem [shape: f32[9,1,8], index: 2, kind: input, shape index: {}]
  %s3 = inlined_call_operand.vmem [shape: bf16[8,4], index: 3, kind: input, shape index: {}]
  %s4 = inlined_call_operand.vmem [shape: f32[4,8], index: 4, kind: input, shape index: {}]
  %s5 = inlined_call_operand.vmem [shape: f32[1,4], index: 5, kind: input, shape index: {}]
  %s6 = inlined_call_operand.hbm [shape: f32[2,4,256], index: 6, kind: output, shape index: {}]
  %s7 = sld [smem:[#allocation0]]
  $region57: #{tpu_custom_call.1} parent=0
    _
  %s9 = ssub.s32 1, %s7
  %s10 = scalar_select 0, %s9, %s7
  $region1: #{tpu_custom_call.1} parent=0
    #allocation3 [shape = 'u8[8192]{0}', space=vmem, size = 0x2000, scoped, tag = 'output window, operand 0']
    #allocation4 [shape = 's32[2]{0}', space=sflag, size = 0x8, scoped, tag = 'scoped memory for tpu_custom_call.1']
    %11 = vsyncpa [#allocation4], 0
    %s12 = scalar_lea.sflag [#allocation4], 1
    %13 = vsyncpa %s12, 0
    loop: start=0, step=1, limit=4
    $region2: #{tpu_custom_call.1} parent=1 // loop_pre_header
      _
    $region3: #{tpu_custom_call.1} parent=1 // loop_header
      %s15 = sphi 0, %s19
      %p16 = scmp.ge.s32.totalorder %s15, 4
      %s25 = sphi 0, %s27
      %s28 = sphi 0, %s25
      %s29 = sphi 0, %s28
      %s45 = sphi 0, %s29
      %s49 = sphi 0, %s49
      %s51 = sphi 0, %s49
      %s52 = sphi 0, %s51
      %s66 = sphi 0, %s52
      %s70 = sphi 0, %s70
      %s72 = sphi 0, %s70
      %s73 = sphi 0, %s72
      %s87 = sphi 0, %s73
      %s91 = sphi 0, %s91
      %s93 = sphi 0, %s91
      %s94 = sphi 0, %s93
      %s108 = sphi 0, %s94
      %s112 = sphi 0, %s112
      %s114 = sphi 0, %s112
      %s115 = sphi 0, %s114
      %s129 = sphi 0, %s115
      %s133 = sphi 0, %s133
      %s135 = sphi 0, %s133
      %s136 = sphi 0, %s135
      %s150 = sphi 0, %s136
      %s156 = sphi 0, %s158
      %s159 = sphi 0, %s156
      %s160 = sphi 0, %s159
      %s176 = sphi 0, %s160
    $region4: #{tpu_custom_call.1} parent=1 // loop_header_branch
      %18 = sbr.rel (%p16) target = $region8
    $region5: #{tpu_custom_call.1} parent=1 // loop_body
      %s20 = ssub.s32 %s15, 1
      %s21 = ssub.s32 %s15, 2
      %s22 = sadd.s32 %s15, 1
      %s23 = ssub.s32 %s15, %s22
      %p24 = scmp.eq.s32.totalorder %s23, 0
      %s26 = sadd.s32 %s25, 1
      %s27 = scalar_select %p24, %s25, %s26
      %p30 = pneg %p24
      %p31 = scmp.eq.s32.totalorder %s15, 1
      %p32 = por %p30, %p31
      %p33 = scmp.ne.s32.totalorder %s25, %s28
      %p34 = scmp.eq.s32.totalorder %s15, 0
      %p35 = por %p33, %p34
      %p36 = scmp.ne.s32.totalorder %s25, %s28
      %p37 = scmp.eq.s32.totalorder %s20, 1
      %p38 = por %p36, %p37
      %p39 = scmp.ne.s32.totalorder %s28, %s29
      %p40 = scmp.eq.s32.totalorder %s20, 0
      %p41 = por %p39, %p40
      %p42 = scmp.ne.s32.totalorder %s28, %s29
      %p43 = scmp.eq.s32.totalorder %s21, 1
      %p44 = por %p42, %p43
      %p46 = scmp.ne.s32.totalorder %s29, %s45
      %p47 = scmp.eq.s32.totalorder %s21, 0
      %p48 = por %p46, %p47
      %s50 = sadd.s32 %s49, 1
      %p53 = scmp.eq.s32.totalorder %s15, 1
      %p54 = scmp.ne.s32.totalorder %s49, %s51
      %p55 = scmp.eq.s32.totalorder %s15, 0
      %p56 = por %p54, %p55
      %p57 = scmp.ne.s32.totalorder %s49, %s51
      %p58 = scmp.eq.s32.totalorder %s20, 1
      %p59 = por %p57, %p58
      %p60 = scmp.ne.s32.totalorder %s51, %s52
      %p61 = scmp.eq.s32.totalorder %s20, 0
      %p62 = por %p60, %p61
      %p63 = scmp.ne.s32.totalorder %s51, %s52
      %p64 = scmp.eq.s32.totalorder %s21, 1
      %p65 = por %p63, %p64
      %p67 = scmp.ne.s32.totalorder %s52, %s66
      %p68 = scmp.eq.s32.totalorder %s21, 0
      %p69 = por %p67, %p68
      %s71 = sadd.s32 %s70, 1
      %p74 = scmp.eq.s32.totalorder %s15, 1
      %p75 = scmp.ne.s32.totalorder %s70, %s72
      %p76 = scmp.eq.s32.totalorder %s15, 0
      %p77 = por %p75, %p76
      %p78 = scmp.ne.s32.totalorder %s70, %s72
      %p79 = scmp.eq.s32.totalorder %s20, 1
      %p80 = por %p78, %p79
      %p81 = scmp.ne.s32.totalorder %s72, %s73
      %p82 = scmp.eq.s32.totalorder %s20, 0
      %p83 = por %p81, %p82
      %p84 = scmp.ne.s32.totalorder %s72, %s73
      %p85 = scmp.eq.s32.totalorder %s21, 1
      %p86 = por %p84, %p85
      %p88 = scmp.ne.s32.totalorder %s73, %s87
      %p89 = scmp.eq.s32.totalorder %s21, 0
      %p90 = por %p88, %p89
      %s92 = sadd.s32 %s91, 1
      %p95 = scmp.eq.s32.totalorder %s15, 1
      %p96 = scmp.ne.s32.totalorder %s91, %s93
      %p97 = scmp.eq.s32.totalorder %s15, 0
      %p98 = por %p96, %p97
      %p99 = scmp.ne.s32.totalorder %s91, %s93
      %p100 = scmp.eq.s32.totalorder %s20, 1
      %p101 = por %p99, %p100
      %p102 = scmp.ne.s32.totalorder %s93, %s94
      %p103 = scmp.eq.s32.totalorder %s20, 0
      %p104 = por %p102, %p103
      %p105 = scmp.ne.s32.totalorder %s93, %s94
      %p106 = scmp.eq.s32.totalorder %s21, 1
      %p107 = por %p105, %p106
      %p109 = scmp.ne.s32.totalorder %s94, %s108
      %p110 = scmp.eq.s32.totalorder %s21, 0
      %p111 = por %p109, %p110
      %s113 = sadd.s32 %s112, 1
      %p116 = scmp.eq.s32.totalorder %s15, 1
      %p117 = scmp.ne.s32.totalorder %s112, %s114
      %p118 = scmp.eq.s32.totalorder %s15, 0
      %p119 = por %p117, %p118
      %p120 = scmp.ne.s32.totalorder %s112, %s114
      %p121 = scmp.eq.s32.totalorder %s20, 1
      %p122 = por %p120, %p121
      %p123 = scmp.ne.s32.totalorder %s114, %s115
      %p124 = scmp.eq.s32.totalorder %s20, 0
      %p125 = por %p123, %p124
      %p126 = scmp.ne.s32.totalorder %s114, %s115
      %p127 = scmp.eq.s32.totalorder %s21, 1
      %p128 = por %p126, %p127
      %p130 = scmp.ne.s32.totalorder %s115, %s129
      %p131 = scmp.eq.s32.totalorder %s21, 0
      %p132 = por %p130, %p131
      %s134 = sadd.s32 %s133, 1
      %p137 = scmp.eq.s32.totalorder %s15, 1
      %p138 = scmp.ne.s32.totalorder %s133, %s135
      %p139 = scmp.eq.s32.totalorder %s15, 0
      %p140 = por %p138, %p139
      %p141 = scmp.ne.s32.totalorder %s133, %s135
      %p142 = scmp.eq.s32.totalorder %s20, 1
      %p143 = por %p141, %p142
      %p144 = scmp.ne.s32.totalorder %s135, %s136
      %p145 = scmp.eq.s32.totalorder %s20, 0
      %p146 = por %p144, %p145
      %p147 = scmp.ne.s32.totalorder %s135, %s136
      %p148 = scmp.eq.s32.totalorder %s21, 1
      %p149 = por %p147, %p148
      %p151 = scmp.ne.s32.totalorder %s136, %s150
      %p152 = scmp.eq.s32.totalorder %s21, 0
      %p153 = por %p151, %p152
      %s154 = ssub.s32 %s15, %s22
      %p155 = scmp.eq.s32.totalorder %s154, 0
      %s157 = sadd.s32 %s156, 1
      %s158 = scalar_select %p155, %s156, %s157
      %p161 = pneg %p155
      %p162 = scmp.eq.s32.totalorder %s15, 1
      %p163 = por %p161, %p162
      %p164 = scmp.ne.s32.totalorder %s156, %s159
      %p165 = scmp.eq.s32.totalorder %s15, 0
      %p166 = por %p164, %p165
      %p167 = scmp.ne.s32.totalorder %s156, %s159
      %p168 = scmp.eq.s32.totalorder %s20, 1
      %p169 = por %p167, %p168
      %p170 = scmp.ne.s32.totalorder %s159, %s160
      %p171 = scmp.eq.s32.totalorder %s20, 0
      %p172 = por %p170, %p171
      %p173 = scmp.ne.s32.totalorder %s159, %s160
      %p174 = scmp.eq.s32.totalorder %s21, 1
      %p175 = por %p173, %p174
      %p177 = scmp.ne.s32.totalorder %s160, %s176
      %p178 = scmp.eq.s32.totalorder %s21, 0
      %p179 = por %p177, %p178
      %p180 = scmp.le.s32.totalorder 1, %s15
      %p181 = scmp.lt.s32.totalorder %s15, 3
      %p182 = pnand %p180, %p181
      %p183 = pneg %p182
      // Predicated region
      $region9: #{tpu_custom_call.1} parent=5 // pred_check
        _
      $region10: #{tpu_custom_call.1} parent=5 // pred_check_branch
        %185 = sbr.rel (%p182) target = $region12
      $region11: #{tpu_custom_call.1} parent=5 // pred_region
        %s186 = ssub.s32 %s15, 1
        // Predicated region
        $region13: #{tpu_custom_call.1} parent=11 // pred_check
          %p187 = pneg %p62
        $region14: #{tpu_custom_call.1} parent=11 // pred_check_branch
          %189 = sbr.rel (%p187) target = $region16
        $region15: #{tpu_custom_call.1} parent=11 // pred_region
          _
        $region16: #{tpu_custom_call.1} parent=11 // pred_fallthru
          _
        // Predicated region
        $region17: #{tpu_custom_call.1} parent=11 // pred_check
          %p190 = pneg %p83
        $region18: #{tpu_custom_call.1} parent=11 // pred_check_branch
          %192 = sbr.rel (%p190) target = $region20
        $region19: #{tpu_custom_call.1} parent=11 // pred_region
          _
        $region20: #{tpu_custom_call.1} parent=11 // pred_fallthru
          _
        // Predicated region
        $region21: #{tpu_custom_call.1} parent=11 // pred_check
          %p193 = pneg %p104
        $region22: #{tpu_custom_call.1} parent=11 // pred_check_branch
          %195 = sbr.rel (%p193) target = $region24
        $region23: #{tpu_custom_call.1} parent=11 // pred_region
          _
        $region24: #{tpu_custom_call.1} parent=11 // pred_fallthru
          _
        // Predicated region
        $region25: #{tpu_custom_call.1} parent=11 // pred_check
          %p196 = pneg %p125
        $region26: #{tpu_custom_call.1} parent=11 // pred_check_branch
          %198 = sbr.rel (%p196) target = $region28
        $region27: #{tpu_custom_call.1} parent=11 // pred_region
          _
        $region28: #{tpu_custom_call.1} parent=11 // pred_fallthru
          _
        // Predicated region
        $region29: #{tpu_custom_call.1} parent=11 // pred_check
          %p199 = pneg %p146
        $region30: #{tpu_custom_call.1} parent=11 // pred_check_branch
          %201 = sbr.rel (%p199) target = $region32
        $region31: #{tpu_custom_call.1} parent=11 // pred_region
          _
        $region32: #{tpu_custom_call.1} parent=11 // pred_fallthru
          _
      $region12: #{tpu_custom_call.1} parent=5 // pred_fallthru
        _
      %p202 = scmp.lt.s32.totalorder %s15, 2
      // Predicated region
      $region33: #{tpu_custom_call.1} parent=5 // pred_check
        %p203 = pneg %p202
      $region34: #{tpu_custom_call.1} parent=5 // pred_check_branch
        %205 = sbr.rel (%p203) target = $region36
      $region35: #{tpu_custom_call.1} parent=5 // pred_region
        // Predicated region
        $region37: #{tpu_custom_call.1} parent=35 // pred_check
          %p206 = pneg %p35
        $region38: #{tpu_custom_call.1} parent=35 // pred_check_branch
          %208 = sbr.rel (%p206) target = $region40
        $region39: #{tpu_custom_call.1} parent=35 // pred_region
          %p209 = scmp.lt.s32.totalorder %s15, 1
          %s210 = scalar_select %p209, %s15, 1
          %s211 = smul.addr %s210, 32
          %s212 = smul.addr %s211, 4
          %s213 = scalar_lea.vmem %s0, %s212
        $region40: #{tpu_custom_call.1} parent=35 // pred_fallthru
          _
      $region36: #{tpu_custom_call.1} parent=5 // pred_fallthru
        _
      %p214 = scmp.le.s32.totalorder 1, %s15
      %p215 = scmp.lt.s32.totalorder %s15, 3
      %p216 = pnand %p214, %p215
      %p217 = pneg %p216
      // Predicated region
      $region41: #{tpu_custom_call.1} parent=5 // pred_check
        _
      $region42: #{tpu_custom_call.1} parent=5 // pred_check_branch
        %219 = sbr.rel (%p216) target = $region44
      $region43: #{tpu_custom_call.1} parent=5 // pred_region
        %s220 = ssub.s32 %s15, 1
        %p221 = scmp.lt.s32.totalorder %s20, 1
        %s222 = scalar_select %p221, %s20, 1
        %s223 = smul.addr %s222, 32
        %s224 = smul.addr %s223, 4
        %s225 = scalar_lea.vmem %s0, %s224
        %p226 = pneg %p41
        %p227 = pneg %p38
        %p228 = pneg %p62
        %p229 = pneg %p59
        %p230 = pneg %p83
        %p231 = pneg %p80
        %p232 = pneg %p104
        %p233 = pneg %p101
        %p234 = pneg %p125
        %p235 = pneg %p122
        %p236 = pneg %p146
        %p237 = pneg %p143
        %p238 = pneg %p172
        %p239 = pneg %p169
        %s240 = sand.u32 %s159, 1
        %s241 = scalar_lea.sflag [#allocation4], %s240
        %s242 = sand.u32 %s159, 1
        %s243 = smul.addr %s242, 8
        %s244 = scalar_lea.vmem [#allocation3], %s243
        %p245 = scmp.lt.s32.totalorder %s20, 1
        %s246 = scalar_select %p245, %s20, 1
        %s247 = smul.addr %s246, 32
        %s248 = smul.addr %s247, 4
        %s249 = scalar_lea.vmem %s0, %s248
        %v251 = vld [vmem:[%s249] sm:$0xf]
        %v252 = vld [vmem:[%s249 + $0x4] sm:$0xf]
        %v253 = vld [vmem:[%s249 + $0x8] sm:$0xf]
        %v254 = vld [vmem:[%s249 + $0xc] sm:$0xf]
        %v255 = vld [vmem:[%s249 + $0x10] sm:$0xf]
        %v256 = vld [vmem:[%s249 + $0x14] sm:$0xf]
        %v257 = vld [vmem:[%s249 + $0x18] sm:$0xf]
        %v258 = vld [vmem:[%s249 + $0x1c] sm:$0xf]
        %v259 = vld [vmem:[%s249 + $0x20] sm:$0xf]
        %v260 = vld [vmem:[%s249 + $0x24] sm:$0xf]
        %v261 = vld [vmem:[%s249 + $0x28] sm:$0xf]
        %v262 = vld [vmem:[%s249 + $0x2c] sm:$0xf]
        %v263 = vld [vmem:[%s249 + $0x30] sm:$0xf]
        %v264 = vld [vmem:[%s249 + $0x34] sm:$0xf]
        %v265 = vld [vmem:[%s249 + $0x38] sm:$0xf]
        %v266 = vld [vmem:[%s249 + $0x3c] sm:$0xf]
        %v267 = vld [vmem:[%s249 + $0x40] sm:$0xf]
        %v268 = vld [vmem:[%s249 + $0x44] sm:$0xf]
        %v269 = vld [vmem:[%s249 + $0x48] sm:$0xf]
        %v270 = vld [vmem:[%s249 + $0x4c] sm:$0xf]
        %v271 = vld [vmem:[%s249 + $0x50] sm:$0xf]
        %v272 = vld [vmem:[%s249 + $0x54] sm:$0xf]
        %v273 = vld [vmem:[%s249 + $0x58] sm:$0xf]
        %v274 = vld [vmem:[%s249 + $0x5c] sm:$0xf]
        %v275 = vld [vmem:[%s249 + $0x60] sm:$0xf]
        %v276 = vld [vmem:[%s249 + $0x64] sm:$0xf]
        %v277 = vld [vmem:[%s249 + $0x68] sm:$0xf]
        %v278 = vld [vmem:[%s249 + $0x6c] sm:$0xf]
        %v279 = vld [vmem:[%s249 + $0x70] sm:$0xf]
        %v280 = vld [vmem:[%s249 + $0x74] sm:$0xf]
        %v281 = vld [vmem:[%s249 + $0x78] sm:$0xf]
        %v282 = vld [vmem:[%s249 + $0x7c] sm:$0xf]
        %v283 = vld [vmem:[%s4] sm:$0xf]
        %v284 = vld [vmem:[%s1] sm:$0x3]
        %v285 = vlaneseq
        %v286 = vshrl.u32 %v285, 7
        %v287 = vsub.s32 0, %v286
        %v288 = vrot.slane %v283, %v287
        %v321 = vunpack.c.l.b16 %v251
        %v322 = vunpack.c.l.b16 %v252
        %v323 = vunpack.c.l.b16 %v253
        %v324 = vunpack.c.l.b16 %v254
        %v325 = vunpack.c.l.b16 %v255
        %v326 = vunpack.c.l.b16 %v256
        %v327 = vunpack.c.l.b16 %v257
        %v328 = vunpack.c.l.b16 %v258
        %v329 = vunpack.c.l.b16 %v259
        %v330 = vunpack.c.l.b16 %v260
        %v331 = vunpack.c.l.b16 %v261
        %v332 = vunpack.c.l.b16 %v262
        %v333 = vunpack.c.l.b16 %v263
        %v334 = vunpack.c.l.b16 %v264
        %v335 = vunpack.c.l.b16 %v265
        %v336 = vunpack.c.l.b16 %v266
        %v337 = vunpack.c.l.b16 %v267
        %v338 = vunpack.c.l.b16 %v268
        %v339 = vunpack.c.l.b16 %v269
        %v340 = vunpack.c.l.b16 %v270
        %v341 = vunpack.c.l.b16 %v271
        %v342 = vunpack.c.l.b16 %v272
        %v343 = vunpack.c.l.b16 %v273
        %v344 = vunpack.c.l.b16 %v274
        %v345 = vunpack.c.l.b16 %v275
        %v346 = vunpack.c.l.b16 %v276
        %v347 = vunpack.c.l.b16 %v277
        %v348 = vunpack.c.l.b16 %v278
        %v349 = vunpack.c.l.b16 %v279
        %v350 = vunpack.c.l.b16 %v280
        %v351 = vunpack.c.l.b16 %v281
        %v352 = vunpack.c.l.b16 %v282
        %v353 = vpack.c.b16 %v322, %v321
        %v354 = vpack.c.b16 %v324, %v323
        %v355 = vpack.c.b16 %v326, %v325
        %v356 = vpack.c.b16 %v328, %v327
        %v357 = vpack.c.b16 %v330, %v329
        %v358 = vpack.c.b16 %v332, %v331
        %v359 = vpack.c.b16 %v334, %v333
        %v360 = vpack.c.b16 %v336, %v335
        %v361 = vpack.c.b16 %v338, %v337
        %v362 = vpack.c.b16 %v340, %v339
        %v363 = vpack.c.b16 %v342, %v341
        %v364 = vpack.c.b16 %v344, %v343
        %v365 = vpack.c.b16 %v346, %v345
        %v366 = vpack.c.b16 %v348, %v347
        %v367 = vpack.c.b16 %v350, %v349
        %v368 = vpack.c.b16 %v352, %v351
        %vm369 = vcmask 31744
        %v371 = vsel %vm369, %v353, 0
        %v374 = vsel %vm369, %v354, 0
        %v377 = vsel %vm369, %v355, 0
        %v380 = vsel %vm369, %v356, 0
        %v383 = vsel %vm369, %v357, 0
        %v386 = vsel %vm369, %v358, 0
        %v389 = vsel %vm369, %v359, 0
        %v392 = vsel %vm369, %v360, 0
        %v395 = vsel %vm369, %v361, 0
        %v398 = vsel %vm369, %v362, 0
        %v401 = vsel %vm369, %v363, 0
        %v404 = vsel %vm369, %v364, 0
        %v407 = vsel %vm369, %v365, 0
        %v410 = vsel %vm369, %v366, 0
        %v413 = vsel %vm369, %v367, 0
        %v416 = vsel %vm369, %v368, 0
        %vm418 = vcmask 1041408
        %v420 = vsel %vm418, %v284, 0
        %422 = vmatprep.subr.bf16.mxu0 0
        %423 = vmatpush1.bf16.msra.mxu0 %v420
        %424 = vmatprep.subr.bf16.mxu0 0
        %425 = vmatpush1.bf16.msra.mxu0 0
        %426 = vmatprep.subr.bf16.mxu0 0
        %427 = vmatpush1.bf16.msra.mxu0 0
        %428 = vmatprep.subr.bf16.mxu0 0
        %429 = vmatpush1.bf16.msra.mxu0 0
        %430 = vmatprep.subr.bf16.mxu0 0
        %431 = vmatpush1.bf16.msra.mxu0 0
        %432 = vmatprep.subr.bf16.mxu0 0
        %433 = vmatpush1.bf16.msra.mxu0 0
        %434 = vmatprep.subr.bf16.mxu0 0
        %435 = vmatpush1.bf16.msra.mxu0 0
        %436 = vmatprep.subr.bf16.mxu0 0
        %437 = vmatpush1.bf16.msra.mxu0 0
        %438 = vmatprep.subr.bf16.mxu0 0
        %439 = vmatpush1.bf16.msra.mxu0 0
        %440 = vmatprep.subr.bf16.mxu0 0
        %441 = vmatpush1.bf16.msra.mxu0 0
        %442 = vmatprep.subr.bf16.mxu0 0
        %443 = vmatpush1.bf16.msra.mxu0 0
        %444 = vmatprep.subr.bf16.mxu0 0
        %445 = vmatpush1.bf16.msra.mxu0 0
        %446 = vmatprep.subr.bf16.mxu0 0
        %447 = vmatpush1.bf16.msra.mxu0 0
        %448 = vmatprep.subr.bf16.mxu0 0
        %449 = vmatpush1.bf16.msra.mxu0 0
        %450 = vmatprep.subr.bf16.mxu0 0
        %451 = vmatpush1.bf16.msra.mxu0 0
        %452 = vmatprep.subr.bf16.mxu0 0
        %453 = vmatpush1.bf16.msra.mxu0 0
        %454 = vmatprep.mubr.bf16.mxu0 0
        %455 = vmatmul.mubr.bf16.gmra.mrb[0].mxu0 %v371
        %v456 = vpop.f32.mrb[0].mxu0
        %v457 = vadd.f32 %v288, %v456
        %v458 = vpop.f32.mrb[0].mxu0
        %v459 = vpop.f32.mrb[0].mxu0
        %v460 = vadd.f32 %v288, %v459
        %v461 = vpop.f32.mrb[0].mxu0
        %462 = vmatprep.mubr.bf16.mxu0 0
        %463 = vmatmul.mubr.bf16.gmra.mrb[0].mxu0 %v374
        %v464 = vpop.f32.mrb[0].mxu0
        %v465 = vadd.f32 %v288, %v464
        %v466 = vpop.f32.mrb[0].mxu0
        %v467 = vpop.f32.mrb[0].mxu0
        %v468 = vadd.f32 %v288, %v467
        %v469 = vpop.f32.mrb[0].mxu0
        %470 = vmatprep.mubr.bf16.mxu0 0
        %471 = vmatmul.mubr.bf16.gmra.mrb[0].mxu0 %v377
        %v472 = vpop.f32.mrb[0].mxu0
        %v473 = vadd.f32 %v288, %v472
        %v474 = vpop.f32.mrb[0].mxu0
        %v475 = vpop.f32.mrb[0].mxu0
        %v476 = vadd.f32 %v288, %v475
        %v477 = vpop.f32.mrb[0].mxu0
        %478 = vmatprep.mubr.bf16.mxu0 0
        %479 = vmatmul.mubr.bf16.gmra.mrb[0].mxu0 %v380
        %v480 = vpop.f32.mrb[0].mxu0
        %v481 = vadd.f32 %v288, %v480
        %v482 = vpop.f32.mrb[0].mxu0
        %v483 = vpop.f32.mrb[0].mxu0
        %v484 = vadd.f32 %v288, %v483
        %v485 = vpop.f32.mrb[0].mxu0
        %486 = vmatprep.mubr.bf16.mxu0 0
        %487 = vmatmul.mubr.bf16.gmra.mrb[0].mxu0 %v383
        %v488 = vpop.f32.mrb[0].mxu0
        %v489 = vadd.f32 %v288, %v488
        %v490 = vpop.f32.mrb[0].mxu0
        %v491 = vpop.f32.mrb[0].mxu0
        %v492 = vadd.f32 %v288, %v491
        %v493 = vpop.f32.mrb[0].mxu0
        %494 = vmatprep.mubr.bf16.mxu0 0
        %495 = vmatmul.mubr.bf16.gmra.mrb[0].mxu0 %v386
        %v496 = vpop.f32.mrb[0].mxu0
        %v497 = vadd.f32 %v288, %v496
        %v498 = vpop.f32.mrb[0].mxu0
        %v499 = vpop.f32.mrb[0].mxu0
        %v500 = vadd.f32 %v288, %v499
        %v501 = vpop.f32.mrb[0].mxu0
        %502 = vmatprep.mubr.bf16.mxu0 0
        %503 = vmatmul.mubr.bf16.gmra.mrb[0].mxu0 %v389
        %v504 = vpop.f32.mrb[0].mxu0
        %v505 = vadd.f32 %v288, %v504
        %v506 = vpop.f32.mrb[0].mxu0
        %v507 = vpop.f32.mrb[0].mxu0
        %v508 = vadd.f32 %v288, %v507
        %v509 = vpop.f32.mrb[0].mxu0
        %510 = vmatprep.mubr.bf16.mxu0 0
        %511 = vmatmul.mubr.bf16.gmra.mrb[0].mxu0 %v392
        %v512 = vpop.f32.mrb[0].mxu0
        %v513 = vadd.f32 %v288, %v512
        %v514 = vpop.f32.mrb[0].mxu0
        %v515 = vpop.f32.mrb[0].mxu0
        %v516 = vadd.f32 %v288, %v515
        %v517 = vpop.f32.mrb[0].mxu0
        %518 = vmatprep.mubr.bf16.mxu0 0
        %519 = vmatmul.mubr.bf16.gmra.mrb[0].mxu0 %v395
        %v520 = vpop.f32.mrb[0].mxu0
        %v521 = vadd.f32 %v288, %v520
        %v522 = vpop.f32.mrb[0].mxu0
        %v523 = vpop.f32.mrb[0].mxu0
        %v524 = vadd.f32 %v288, %v523
        %v525 = vpop.f32.mrb[0].mxu0
        %526 = vmatprep.mubr.bf16.mxu0 0
        %527 = vmatmul.mubr.bf16.gmra.mrb[0].mxu0 %v398
        %v528 = vpop.f32.mrb[0].mxu0
        %v529 = vadd.f32 %v288, %v528
        %v530 = vpop.f32.mrb[0].mxu0
        %v531 = vpop.f32.mrb[0].mxu0
        %v532 = vadd.f32 %v288, %v531
        %v533 = vpop.f32.mrb[0].mxu0
        %534 = vmatprep.mubr.bf16.mxu0 0
        %535 = vmatmul.mubr.bf16.gmra.mrb[0].mxu0 %v401
        %v536 = vpop.f32.mrb[0].mxu0
        %v537 = vadd.f32 %v288, %v536
        %v538 = vpop.f32.mrb[0].mxu0
        %v539 = vpop.f32.mrb[0].mxu0
        %v540 = vadd.f32 %v288, %v539
        %v541 = vpop.f32.mrb[0].mxu0
        %542 = vmatprep.mubr.bf16.mxu0 0
        %543 = vmatmul.mubr.bf16.gmra.mrb[0].mxu0 %v404
        %v544 = vpop.f32.mrb[0].mxu0
        %v545 = vadd.f32 %v288, %v544
        %v546 = vpop.f32.mrb[0].mxu0
        %v547 = vpop.f32.mrb[0].mxu0
        %v548 = vadd.f32 %v288, %v547
        %v549 = vpop.f32.mrb[0].mxu0
        %550 = vmatprep.mubr.bf16.mxu0 0
        %551 = vmatmul.mubr.bf16.gmra.mrb[0].mxu0 %v407
        %v552 = vpop.f32.mrb[0].mxu0
        %v553 = vadd.f32 %v288, %v552
        %v554 = vpop.f32.mrb[0].mxu0
        %v555 = vpop.f32.mrb[0].mxu0
        %v556 = vadd.f32 %v288, %v555
        %v557 = vpop.f32.mrb[0].mxu0
        %558 = vmatprep.mubr.bf16.mxu0 0
        %559 = vmatmul.mubr.bf16.gmra.mrb[0].mxu0 %v410
        %v560 = vpop.f32.mrb[0].mxu0
        %v561 = vadd.f32 %v288, %v560
        %v562 = vpop.f32.mrb[0].mxu0
        %v563 = vpop.f32.mrb[0].mxu0
        %v564 = vadd.f32 %v288, %v563
        %v565 = vpop.f32.mrb[0].mxu0
        %566 = vmatprep.mubr.bf16.mxu0 0
        %567 = vmatmul.mubr.bf16.gmra.mrb[0].mxu0 %v413
        %v568 = vpop.f32.mrb[0].mxu0
        %v569 = vadd.f32 %v288, %v568
        %v570 = vpop.f32.mrb[0].mxu0
        %v571 = vpop.f32.mrb[0].mxu0
        %v572 = vadd.f32 %v288, %v571
        %v573 = vpop.f32.mrb[0].mxu0
        %574 = vmatprep.mubr.bf16.mxu0 0
        %575 = vmatmul.mubr.bf16.gmra.mrb[0].mxu0 %v416
        %v576 = vpop.f32.mrb[0].mxu0
        %v577 = vadd.f32 %v288, %v576
        %v578 = vpop.f32.mrb[0].mxu0
        %v579 = vpop.f32.mrb[0].mxu0
        %v580 = vadd.f32 %v288, %v579
        %v581 = vpop.f32.mrb[0].mxu0
        %582 = vdwg.mxu0
        %vm583 = vcmp.gt.f32.partialorder %v457, 0.0
        %vm584 = vcmp.gt.f32.partialorder %v460, 0.0
        %vm585 = vcmp.gt.f32.partialorder %v465, 0.0
        %vm586 = vcmp.gt.f32.partialorder %v468, 0.0
        %vm587 = vcmp.gt.f32.partialorder %v473, 0.0
        %vm588 = vcmp.gt.f32.partialorder %v476, 0.0
        %vm589 = vcmp.gt.f32.partialorder %v481, 0.0
        %vm590 = vcmp.gt.f32.partialorder %v484, 0.0
        %vm591 = vcmp.gt.f32.partialorder %v489, 0.0
        %vm592 = vcmp.gt.f32.partialorder %v492, 0.0
        %vm593 = vcmp.gt.f32.partialorder %v497, 0.0
        %vm594 = vcmp.gt.f32.partialorder %v500, 0.0
        %vm595 = vcmp.gt.f32.partialorder %v505, 0.0
        %vm596 = vcmp.gt.f32.partialorder %v508, 0.0
        %vm597 = vcmp.gt.f32.partialorder %v513, 0.0
        %vm598 = vcmp.gt.f32.partialorder %v516, 0.0
        %vm599 = vcmp.gt.f32.partialorder %v521, 0.0
        %vm600 = vcmp.gt.f32.partialorder %v524, 0.0
        %vm601 = vcmp.gt.f32.partialorder %v529, 0.0
        %vm602 = vcmp.gt.f32.partialorder %v532, 0.0
        %vm603 = vcmp.gt.f32.partialorder %v537, 0.0
        %vm604 = vcmp.gt.f32.partialorder %v540, 0.0
        %vm605 = vcmp.gt.f32.partialorder %v545, 0.0
        %vm606 = vcmp.gt.f32.partialorder %v548, 0.0
        %vm607 = vcmp.gt.f32.partialorder %v553, 0.0
        %vm608 = vcmp.gt.f32.partialorder %v556, 0.0
        %vm609 = vcmp.gt.f32.partialorder %v561, 0.0
        %vm610 = vcmp.gt.f32.partialorder %v564, 0.0
        %vm611 = vcmp.gt.f32.partialorder %v569, 0.0
        %vm612 = vcmp.gt.f32.partialorder %v572, 0.0
        %vm613 = vcmp.gt.f32.partialorder %v577, 0.0
        %vm614 = vcmp.gt.f32.partialorder %v580, 0.0
        %v615 = vlaneseq
        %v616 = vshrl.u32 %v615, 7
        %v617 = vsub.s32 1, %v616
        %v618 = vrot.slane %v283, %v617
        %v619 = vmul.f32 %v457, %v618
        %v620 = vmul.f32 %v460, %v618
        %v621 = vmul.f32 %v465, %v618
        %v622 = vmul.f32 %v468, %v618
        %v623 = vmul.f32 %v473, %v618
        %v624 = vmul.f32 %v476, %v618
        %v625 = vmul.f32 %v481, %v618
        %v626 = vmul.f32 %v484, %v618
        %v627 = vmul.f32 %v489, %v618
        %v628 = vmul.f32 %v492, %v618
        %v629 = vmul.f32 %v497, %v618
        %v630 = vmul.f32 %v500, %v618
        %v631 = vmul.f32 %v505, %v618
        %v632 = vmul.f32 %v508, %v618
        %v633 = vmul.f32 %v513, %v618
        %v634 = vmul.f32 %v516, %v618
        %v635 = vmul.f32 %v521, %v618
        %v636 = vmul.f32 %v524, %v618
        %v637 = vmul.f32 %v529, %v618
        %v638 = vmul.f32 %v532, %v618
        %v639 = vmul.f32 %v537, %v618
        %v640 = vmul.f32 %v540, %v618
        %v641 = vmul.f32 %v545, %v618
        %v642 = vmul.f32 %v548, %v618
        %v643 = vmul.f32 %v553, %v618
        %v644 = vmul.f32 %v556, %v618
        %v645 = vmul.f32 %v561, %v618
        %v646 = vmul.f32 %v564, %v618
        %v647 = vmul.f32 %v569, %v618
        %v648 = vmul.f32 %v572, %v618
        %v649 = vmul.f32 %v577, %v618
        %v650 = vmul.f32 %v580, %v618
        %v651 = vsel %vm583, %v457, %v619
        %v652 = vsel %vm584, %v460, %v620
        %v653 = vsel %vm585, %v465, %v621
        %v654 = vsel %vm586, %v468, %v622
        %v655 = vsel %vm587, %v473, %v623
        %v656 = vsel %vm588, %v476, %v624
        %v657 = vsel %vm589, %v481, %v625
        %v658 = vsel %vm590, %v484, %v626
        %v659 = vsel %vm591, %v489, %v627
        %v660 = vsel %vm592, %v492, %v628
        %v661 = vsel %vm593, %v497, %v629
        %v662 = vsel %vm594, %v500, %v630
        %v663 = vsel %vm595, %v505, %v631
        %v664 = vsel %vm596, %v508, %v632
        %v665 = vsel %vm597, %v513, %v633
        %v666 = vsel %vm598, %v516, %v634
        %v667 = vsel %vm599, %v521, %v635
        %v668 = vsel %vm600, %v524, %v636
        %v669 = vsel %vm601, %v529, %v637
        %v670 = vsel %vm602, %v532, %v638
        %v671 = vsel %vm603, %v537, %v639
        %v672 = vsel %vm604, %v540, %v640
        %v673 = vsel %vm605, %v545, %v641
        %v674 = vsel %vm606, %v548, %v642
        %v675 = vsel %vm607, %v553, %v643
        %v676 = vsel %vm608, %v556, %v644
        %v677 = vsel %vm609, %v561, %v645
        %v678 = vsel %vm610, %v564, %v646
        %v679 = vsel %vm611, %v569, %v647
        %v680 = vsel %vm612, %v572, %v648
        %v681 = vsel %vm613, %v577, %v649
        %v682 = vsel %vm614, %v580, %v650
        %vm683 = vcmask 64512
        %684 = vst.msk [vmem:[#allocation2] sm:$0xff] %vm683, 0.0
        %685 = vst.msk [vmem:[#allocation2 + $0x8] sm:$0xff] %vm683, 0.0
        %vm686 = vcmask 58368
        %687 = vst.msk [vmem:[#allocation2 + $0x10] sm:$0x3] %vm686, 0.0
        %688 = vst.msk [vmem:[#allocation2 + $0x18] sm:$0xff] %vm683, 0.0
        %689 = vst.msk [vmem:[#allocation2 + $0x20] sm:$0xff] %vm683, 0.0
        %690 = vst.msk [vmem:[#allocation2 + $0x28] sm:$0x3] %vm686, 0.0
        %691 = vst.msk [vmem:[#allocation2 + $0x30] sm:$0xff] %vm683, 0.0
        %692 = vst.msk [vmem:[#allocation2 + $0x38] sm:$0xff] %vm683, 0.0
        %693 = vst.msk [vmem:[#allocation2 + $0x40] sm:$0x3] %vm686, 0.0
        %694 = vst.msk [vmem:[#allocation2 + $0x48] sm:$0xff] %vm683, 0.0
        %695 = vst.msk [vmem:[#allocation2 + $0x50] sm:$0xff] %vm683, 0.0
        %696 = vst.msk [vmem:[#allocation2 + $0x58] sm:$0x3] %vm686, 0.0
        %697 = vst.msk [vmem:[#allocation2 + $0x60] sm:$0xff] %vm683, 0.0
        %698 = vst.msk [vmem:[#allocation2 + $0x68] sm:$0xff] %vm683, 0.0
        %699 = vst.msk [vmem:[#allocation2 + $0x70] sm:$0x3] %vm686, 0.0
        %700 = vst.msk [vmem:[#allocation2 + $0x78] sm:$0xff] %vm683, 0.0
        %701 = vst.msk [vmem:[#allocation2 + $0x80] sm:$0xff] %vm683, 0.0
        %702 = vst.msk [vmem:[#allocation2 + $0x88] sm:$0x3] %vm686, 0.0
        %703 = vst.msk [vmem:[#allocation2 + $0x90] sm:$0xff] %vm683, 0.0
        %704 = vst.msk [vmem:[#allocation2 + $0x98] sm:$0xff] %vm683, 0.0
        %705 = vst.msk [vmem:[#allocation2 + $0xa0] sm:$0x3] %vm686, 0.0
        %706 = vst.msk [vmem:[#allocation2 + $0xa8] sm:$0xff] %vm683, 0.0
        %707 = vst.msk [vmem:[#allocation2 + $0xb0] sm:$0xff] %vm683, 0.0
        %708 = vst.msk [vmem:[#allocation2 + $0xb8] sm:$0x3] %vm686, 0.0
        %709 = vst.msk [vmem:[#allocation2 + $0xc0] sm:$0xff] %vm683, 0.0
        %710 = vst.msk [vmem:[#allocation2 + $0xc8] sm:$0xff] %vm683, 0.0
        %711 = vst.msk [vmem:[#allocation2 + $0xd0] sm:$0x3] %vm686, 0.0
        %712 = vst.msk [vmem:[#allocation2 + $0xd8] sm:$0xff] %vm683, 0.0
        %713 = vst.msk [vmem:[#allocation2 + $0xe0] sm:$0xff] %vm683, 0.0
        %714 = vst.msk [vmem:[#allocation2 + $0xe8] sm:$0x3] %vm686, 0.0
        %715 = vst.msk [vmem:[#allocation2 + $0xf0] sm:$0xff] %vm683, 0.0
        %716 = vst.msk [vmem:[#allocation2 + $0xf8] sm:$0xff] %vm683, 0.0
        %717 = vst.msk [vmem:[#allocation2 + $0x100] sm:$0x3] %vm686, 0.0
        %718 = vst.msk [vmem:[#allocation2 + $0x108] sm:$0xff] %vm683, 0.0
        %719 = vst.msk [vmem:[#allocation2 + $0x110] sm:$0xff] %vm683, 0.0
        %720 = vst.msk [vmem:[#allocation2 + $0x118] sm:$0x3] %vm686, 0.0
        %721 = vst.msk [vmem:[#allocation2 + $0x120] sm:$0xff] %vm683, 0.0
        %722 = vst.msk [vmem:[#allocation2 + $0x128] sm:$0xff] %vm683, 0.0
        %723 = vst.msk [vmem:[#allocation2 + $0x130] sm:$0x3] %vm686, 0.0
        %724 = vst.msk [vmem:[#allocation2 + $0x138] sm:$0xff] %vm683, 0.0
        %725 = vst.msk [vmem:[#allocation2 + $0x140] sm:$0xff] %vm683, 0.0
        %726 = vst.msk [vmem:[#allocation2 + $0x148] sm:$0x3] %vm686, 0.0
        %727 = vst.msk [vmem:[#allocation2 + $0x150] sm:$0xff] %vm683, 0.0
        %728 = vst.msk [vmem:[#allocation2 + $0x158] sm:$0xff] %vm683, 0.0
        %729 = vst.msk [vmem:[#allocation2 + $0x160] sm:$0x3] %vm686, 0.0
        %730 = vst.msk [vmem:[#allocation2 + $0x168] sm:$0xff] %vm683, 0.0
        %731 = vst.msk [vmem:[#allocation2 + $0x170] sm:$0xff] %vm683, 0.0
        %732 = vst.msk [vmem:[#allocation2 + $0x178] sm:$0x3] %vm686, 0.0
        %733 = vst.msk [vmem:[#allocation2 + $0x180] sm:$0xff] %vm683, 0.0
        %734 = vst.msk [vmem:[#allocation2 + $0x188] sm:$0xff] %vm683, 0.0
        %735 = vst.msk [vmem:[#allocation2 + $0x190] sm:$0x3] %vm686, 0.0
        %736 = vst.msk [vmem:[#allocation2 + $0x198] sm:$0xff] %vm683, 0.0
        %737 = vst.msk [vmem:[#allocation2 + $0x1a0] sm:$0xff] %vm683, 0.0
        %738 = vst.msk [vmem:[#allocation2 + $0x1a8] sm:$0x3] %vm686, 0.0
        %s739 = scalar_lea.vmem [#allocation2], 24
        %740 = vst.msk [vmem:[%s739 + $0x1] sm:$0xff] %vm683, %v651
        %741 = vst.msk [vmem:[%s739 + $0x9] sm:$0xff] %vm683, %v652
        %742 = vst.msk [vmem:[%s739 + $0x19] sm:$0xff] %vm683, %v653
        %743 = vst.msk [vmem:[%s739 + $0x21] sm:$0xff] %vm683, %v654
        %744 = vst.msk [vmem:[%s739 + $0x31] sm:$0xff] %vm683, %v655
        %745 = vst.msk [vmem:[%s739 + $0x39] sm:$0xff] %vm683, %v656
        %746 = vst.msk [vmem:[%s739 + $0x49] sm:$0xff] %vm683, %v657
        %747 = vst.msk [vmem:[%s739 + $0x51] sm:$0xff] %vm683, %v658
        %748 = vst.msk [vmem:[%s739 + $0x61] sm:$0xff] %vm683, %v659
        %749 = vst.msk [vmem:[%s739 + $0x69] sm:$0xff] %vm683, %v660
        %750 = vst.msk [vmem:[%s739 + $0x79] sm:$0xff] %vm683, %v661
        %751 = vst.msk [vmem:[%s739 + $0x81] sm:$0xff] %vm683, %v662
        %752 = vst.msk [vmem:[%s739 + $0x91] sm:$0xff] %vm683, %v663
        %753 = vst.msk [vmem:[%s739 + $0x99] sm:$0xff] %vm683, %v664
        %754 = vst.msk [vmem:[%s739 + $0xa9] sm:$0xff] %vm683, %v665
        %755 = vst.msk [vmem:[%s739 + $0xb1] sm:$0xff] %vm683, %v666
        %756 = vst.msk [vmem:[%s739 + $0xc1] sm:$0xff] %vm683, %v667
        %757 = vst.msk [vmem:[%s739 + $0xc9] sm:$0xff] %vm683, %v668
        %758 = vst.msk [vmem:[%s739 + $0xd9] sm:$0xff] %vm683, %v669
        %759 = vst.msk [vmem:[%s739 + $0xe1] sm:$0xff] %vm683, %v670
        %760 = vst.msk [vmem:[%s739 + $0xf1] sm:$0xff] %vm683, %v671
        %761 = vst.msk [vmem:[%s739 + $0xf9] sm:$0xff] %vm683, %v672
        %762 = vst.msk [vmem:[%s739 + $0x109] sm:$0xff] %vm683, %v673
        %763 = vst.msk [vmem:[%s739 + $0x111] sm:$0xff] %vm683, %v674
        %764 = vst.msk [vmem:[%s739 + $0x121] sm:$0xff] %vm683, %v675
        %765 = vst.msk [vmem:[%s739 + $0x129] sm:$0xff] %vm683, %v676
        %766 = vst.msk [vmem:[%s739 + $0x139] sm:$0xff] %vm683, %v677
        %767 = vst.msk [vmem:[%s739 + $0x141] sm:$0xff] %vm683, %v678
        %768 = vst.msk [vmem:[%s739 + $0x151] sm:$0xff] %vm683, %v679
        %769 = vst.msk [vmem:[%s739 + $0x159] sm:$0xff] %vm683, %v680
        %770 = vst.msk [vmem:[%s739 + $0x169] sm:$0xff] %vm683, %v681
        %771 = vst.msk [vmem:[%s739 + $0x171] sm:$0xff] %vm683, %v682
        %v772 = vld [vmem:[#allocation2] sm:$0xff]
        %v773 = vld [vmem:[#allocation2 + $0x8] sm:$0xff]
        %v774 = vld [vmem:[#allocation2 + $0x10] sm:$0x3]
        %v775 = vld [vmem:[#allocation2 + $0x18] sm:$0xff]
        %v776 = vld [vmem:[#allocation2 + $0x20] sm:$0xff]
        %v777 = vld [vmem:[#allocation2 + $0x28] sm:$0x3]
        %v778 = vld [vmem:[#allocation2 + $0x30] sm:$0xff]
        %v779 = vld [vmem:[#allocation2 + $0x38] sm:$0xff]
        %v780 = vld [vmem:[#allocation2 + $0x40] sm:$0x3]
        %v781 = vld [vmem:[#allocation2 + $0x48] sm:$0xff]
        %v782 = vld [vmem:[#allocation2 + $0x50] sm:$0xff]
        %v783 = vld [vmem:[#allocation2 + $0x58] sm:$0x3]
        %v784 = vld [vmem:[#allocation2 + $0x60] sm:$0xff]
        %v785 = vld [vmem:[#allocation2 + $0x68] sm:$0xff]
        %v786 = vld [vmem:[#allocation2 + $0x70] sm:$0x3]
        %v787 = vld [vmem:[#allocation2 + $0x78] sm:$0xff]
        %v788 = vld [vmem:[#allocation2 + $0x80] sm:$0xff]
        %v789 = vld [vmem:[#allocation2 + $0x88] sm:$0x3]
        %v790 = vld [vmem:[#allocation2 + $0x90] sm:$0xff]
        %v791 = vld [vmem:[#allocation2 + $0x98] sm:$0xff]
        %v792 = vld [vmem:[#allocation2 + $0xa0] sm:$0x3]
        %v793 = vld [vmem:[#allocation2 + $0xa8] sm:$0xff]
        %v794 = vld [vmem:[#allocation2 + $0xb0] sm:$0xff]
        %v795 = vld [vmem:[#allocation2 + $0xb8] sm:$0x3]
        %v796 = vld [vmem:[#allocation2 + $0xc0] sm:$0xff]
        %v797 = vld [vmem:[#allocation2 + $0xc8] sm:$0xff]
        %v798 = vld [vmem:[#allocation2 + $0xd0] sm:$0x3]
        %v799 = vld [vmem:[#allocation2 + $0xd8] sm:$0xff]
        %v800 = vld [vmem:[#allocation2 + $0xe0] sm:$0xff]
        %v801 = vld [vmem:[#allocation2 + $0xe8] sm:$0x3]
        %v802 = vld [vmem:[#allocation2 + $0xf0] sm:$0xff]
        %v803 = vld [vmem:[#allocation2 + $0xf8] sm:$0xff]
        %v804 = vld [vmem:[#allocation2 + $0x100] sm:$0x3]
        %v805 = vld [vmem:[#allocation2 + $0x108] sm:$0xff]
        %v806 = vld [vmem:[#allocation2 + $0x110] sm:$0xff]
        %v807 = vld [vmem:[#allocation2 + $0x118] sm:$0x3]
        %v808 = vld [vmem:[#allocation2 + $0x120] sm:$0xff]
        %v809 = vld [vmem:[#allocation2 + $0x128] sm:$0xff]
        %v810 = vld [vmem:[#allocation2 + $0x130] sm:$0x3]
        %v811 = vld [vmem:[#allocation2 + $0x138] sm:$0xff]
        %v812 = vld [vmem:[#allocation2 + $0x140] sm:$0xff]
        %v813 = vld [vmem:[#allocation2 + $0x148] sm:$0x3]
        %v814 = vld [vmem:[#allocation2 + $0x150] sm:$0xff]
        %v815 = vld [vmem:[#allocation2 + $0x158] sm:$0xff]
        %v816 = vld [vmem:[#allocation2 + $0x160] sm:$0x3]
        %v817 = vld [vmem:[#allocation2 + $0x168] sm:$0xff]
        %v818 = vld [vmem:[#allocation2 + $0x170] sm:$0xff]
        %v819 = vld [vmem:[#allocation2 + $0x178] sm:$0x3]
        %v820 = vld [vmem:[#allocation2 + $0x180] sm:$0xff]
        %v821 = vld [vmem:[#allocation2 + $0x188] sm:$0xff]
        %v822 = vld [vmem:[#allocation2 + $0x190] sm:$0x3]
        %v823 = vld [vmem:[#allocation2 + $0x198] sm:$0xff]
        %v824 = vld [vmem:[#allocation2 + $0x1a0] sm:$0xff]
        %v825 = vld [vmem:[#allocation2 + $0x1a8] sm:$0x3]
        %v826 = vld [vmem:[%s2] sm:$0x1]
        %v827 = vld [vmem:[%s2 + $0x1] sm:$0x1]
        %v828 = vld [vmem:[%s2 + $0x2] sm:$0x1]
        %v829 = vld [vmem:[%s2 + $0x3] sm:$0x1]
        %v830 = vld [vmem:[%s2 + $0x4] sm:$0x1]
        %v831 = vld [vmem:[%s2 + $0x5] sm:$0x1]
        %v832 = vld [vmem:[%s2 + $0x6] sm:$0x1]
        %v833 = vld [vmem:[%s2 + $0x7] sm:$0x1]
        %v834 = vld [vmem:[%s2 + $0x8] sm:$0x1]
        %v836 = vlaneseq
        %v837 = vshrl.u32 %v836, 7
        %v838 = vsub.s32 0, %v837
        %v839 = vrot.slane %v826, %v838
        %v841 = vmul.f32 %v772, %v839
        %v842 = vmul.f32 %v773, %v839
        %v843 = vmul.f32 %v775, %v839
        %v844 = vmul.f32 %v776, %v839
        %v845 = vmul.f32 %v778, %v839
        %v846 = vmul.f32 %v779, %v839
        %v847 = vmul.f32 %v781, %v839
        %v848 = vmul.f32 %v782, %v839
        %v849 = vmul.f32 %v784, %v839
        %v850 = vmul.f32 %v785, %v839
        %v851 = vmul.f32 %v787, %v839
        %v852 = vmul.f32 %v788, %v839
        %v853 = vmul.f32 %v790, %v839
        %v854 = vmul.f32 %v791, %v839
        %v855 = vmul.f32 %v793, %v839
        %v856 = vmul.f32 %v794, %v839
        %v857 = vmul.f32 %v796, %v839
        %v858 = vmul.f32 %v797, %v839
        %v859 = vmul.f32 %v799, %v839
        %v860 = vmul.f32 %v800, %v839
        %v861 = vmul.f32 %v802, %v839
        %v862 = vmul.f32 %v803, %v839
        %v863 = vmul.f32 %v805, %v839
        %v864 = vmul.f32 %v806, %v839
        %v865 = vmul.f32 %v808, %v839
        %v866 = vmul.f32 %v809, %v839
        %v867 = vmul.f32 %v811, %v839
        %v868 = vmul.f32 %v812, %v839
        %v869 = vmul.f32 %v814, %v839
        %v870 = vmul.f32 %v815, %v839
        %v871 = vmul.f32 %v817, %v839
        %v872 = vmul.f32 %v818, %v839
        %v873 = vadd.f32 %v841, 0.0
        %v874 = vadd.f32 %v842, 0.0
        %v875 = vadd.f32 %v843, 0.0
        %v876 = vadd.f32 %v844, 0.0
        %v877 = vadd.f32 %v845, 0.0
        %v878 = vadd.f32 %v846, 0.0
        %v879 = vadd.f32 %v847, 0.0
        %v880 = vadd.f32 %v848, 0.0
        %v881 = vadd.f32 %v849, 0.0
        %v882 = vadd.f32 %v850, 0.0
        %v883 = vadd.f32 %v851, 0.0
        %v884 = vadd.f32 %v852, 0.0
        %v885 = vadd.f32 %v853, 0.0
        %v886 = vadd.f32 %v854, 0.0
        %v887 = vadd.f32 %v855, 0.0
        %v888 = vadd.f32 %v856, 0.0
        %v889 = vadd.f32 %v857, 0.0
        %v890 = vadd.f32 %v858, 0.0
        %v891 = vadd.f32 %v859, 0.0
        %v892 = vadd.f32 %v860, 0.0
        %v893 = vadd.f32 %v861, 0.0
        %v894 = vadd.f32 %v862, 0.0
        %v895 = vadd.f32 %v863, 0.0
        %v896 = vadd.f32 %v864, 0.0
        %v897 = vadd.f32 %v865, 0.0
        %v898 = vadd.f32 %v866, 0.0
        %v899 = vadd.f32 %v867, 0.0
        %v900 = vadd.f32 %v868, 0.0
        %v901 = vadd.f32 %v869, 0.0
        %v902 = vadd.f32 %v870, 0.0
        %v903 = vadd.f32 %v871, 0.0
        %v904 = vadd.f32 %v872, 0.0
        %v906 = vlaneseq
        %v907 = vshrl.u32 %v906, 7
        %v908 = vsub.s32 0, %v907
        %v909 = vrot.slane %v827, %v908
        %v911 = vmul.f32 %v772, %v909
        %v912 = vmul.f32 %v773, %v909
        %v913 = vmul.f32 %v774, %v909
        %v914 = vmul.f32 %v775, %v909
        %v915 = vmul.f32 %v776, %v909
        %v916 = vmul.f32 %v777, %v909
        %v917 = vmul.f32 %v778, %v909
        %v918 = vmul.f32 %v779, %v909
        %v919 = vmul.f32 %v780, %v909
        %v920 = vmul.f32 %v781, %v909
        %v921 = vmul.f32 %v782, %v909
        %v922 = vmul.f32 %v783, %v909
        %v923 = vmul.f32 %v784, %v909
        %v924 = vmul.f32 %v785, %v909
        %v925 = vmul.f32 %v786, %v909
        %v926 = vmul.f32 %v787, %v909
        %v927 = vmul.f32 %v788, %v909
        %v928 = vmul.f32 %v789, %v909
        %v929 = vmul.f32 %v790, %v909
        %v930 = vmul.f32 %v791, %v909
        %v931 = vmul.f32 %v792, %v909
        %v932 = vmul.f32 %v793, %v909
        %v933 = vmul.f32 %v794, %v909
        %v934 = vmul.f32 %v795, %v909
        %v935 = vmul.f32 %v796, %v909
        %v936 = vmul.f32 %v797, %v909
        %v937 = vmul.f32 %v798, %v909
        %v938 = vmul.f32 %v799, %v909
        %v939 = vmul.f32 %v800, %v909
        %v940 = vmul.f32 %v801, %v909
        %v941 = vmul.f32 %v802, %v909
        %v942 = vmul.f32 %v803, %v909
        %v943 = vmul.f32 %v804, %v909
        %v944 = vmul.f32 %v805, %v909
        %v945 = vmul.f32 %v806, %v909
        %v946 = vmul.f32 %v807, %v909
        %v947 = vmul.f32 %v808, %v909
        %v948 = vmul.f32 %v809, %v909
        %v949 = vmul.f32 %v810, %v909
        %v950 = vmul.f32 %v811, %v909
        %v951 = vmul.f32 %v812, %v909
        %v952 = vmul.f32 %v813, %v909
        %v953 = vmul.f32 %v814, %v909
        %v954 = vmul.f32 %v815, %v909
        %v955 = vmul.f32 %v816, %v909
        %v956 = vmul.f32 %v817, %v909
        %v957 = vmul.f32 %v818, %v909
        %v958 = vmul.f32 %v819, %v909
        %vm1007 = vcmask 1046528
        %v1008 = vrot.slane %v911, 1
        %v1009 = vrot.slane %v912, 1
        %v1010 = vsel %vm1007, %v1008, %v1009
        %v1011 = vrot.slane %v913, 1
        %v1012 = vsel %vm1007, %v1009, %v1011
        %v1013 = vrot.slane %v914, 1
        %v1014 = vrot.slane %v915, 1
        %v1015 = vsel %vm1007, %v1013, %v1014
        %v1016 = vrot.slane %v916, 1
        %v1017 = vsel %vm1007, %v1014, %v1016
        %v1018 = vrot.slane %v917, 1
        %v1019 = vrot.slane %v918, 1
        %v1020 = vsel %vm1007, %v1018, %v1019
        %v1021 = vrot.slane %v919, 1
        %v1022 = vsel %vm1007, %v1019, %v1021
        %v1023 = vrot.slane %v920, 1
        %v1024 = vrot.slane %v921, 1
        %v1025 = vsel %vm1007, %v1023, %v1024
        %v1026 = vrot.slane %v922, 1
        %v1027 = vsel %vm1007, %v1024, %v1026
        %v1028 = vrot.slane %v923, 1
        %v1029 = vrot.slane %v924, 1
        %v1030 = vsel %vm1007, %v1028, %v1029
        %v1031 = vrot.slane %v925, 1
        %v1032 = vsel %vm1007, %v1029, %v1031
        %v1033 = vrot.slane %v926, 1
        %v1034 = vrot.slane %v927, 1
        %v1035 = vsel %vm1007, %v1033, %v1034
        %v1036 = vrot.slane %v928, 1
        %v1037 = vsel %vm1007, %v1034, %v1036
        %v1038 = vrot.slane %v929, 1
        %v1039 = vrot.slane %v930, 1
        %v1040 = vsel %vm1007, %v1038, %v1039
        %v1041 = vrot.slane %v931, 1
        %v1042 = vsel %vm1007, %v1039, %v1041
        %v1043 = vrot.slane %v932, 1
        %v1044 = vrot.slane %v933, 1
        %v1045 = vsel %vm1007, %v1043, %v1044
        %v1046 = vrot.slane %v934, 1
        %v1047 = vsel %vm1007, %v1044, %v1046
        %v1048 = vrot.slane %v935, 1
        %v1049 = vrot.slane %v936, 1
        %v1050 = vsel %vm1007, %v1048, %v1049
        %v1051 = vrot.slane %v937, 1
        %v1052 = vsel %vm1007, %v1049, %v1051
        %v1053 = vrot.slane %v938, 1
        %v1054 = vrot.slane %v939, 1
        %v1055 = vsel %vm1007, %v1053, %v1054
        %v1056 = vrot.slane %v940, 1
        %v1057 = vsel %vm1007, %v1054, %v1056
        %v1058 = vrot.slane %v941, 1
        %v1059 = vrot.slane %v942, 1
        %v1060 = vsel %vm1007, %v1058, %v1059
        %v1061 = vrot.slane %v943, 1
        %v1062 = vsel %vm1007, %v1059, %v1061
        %v1063 = vrot.slane %v944, 1
        %v1064 = vrot.slane %v945, 1
        %v1065 = vsel %vm1007, %v1063, %v1064
        %v1066 = vrot.slane %v946, 1
        %v1067 = vsel %vm1007, %v1064, %v1066
        %v1068 = vrot.slane %v947, 1
        %v1069 = vrot.slane %v948, 1
        %v1070 = vsel %vm1007, %v1068, %v1069
        %v1071 = vrot.slane %v949, 1
        %v1072 = vsel %vm1007, %v1069, %v1071
        %v1073 = vrot.slane %v950, 1
        %v1074 = vrot.slane %v951, 1
        %v1075 = vsel %vm1007, %v1073, %v1074
        %v1076 = vrot.slane %v952, 1
        %v1077 = vsel %vm1007, %v1074, %v1076
        %v1078 = vrot.slane %v953, 1
        %v1079 = vrot.slane %v954, 1
        %v1080 = vsel %vm1007, %v1078, %v1079
        %v1081 = vrot.slane %v955, 1
        %v1082 = vsel %vm1007, %v1079, %v1081
        %v1083 = vrot.slane %v956, 1
        %v1084 = vrot.slane %v957, 1
        %v1085 = vsel %vm1007, %v1083, %v1084
        %v1086 = vrot.slane %v958, 1
        %v1087 = vsel %vm1007, %v1084, %v1086
        %v1120 = vadd.f32 %v873, %v1010
        %v1121 = vadd.f32 %v874, %v1012
        %v1122 = vadd.f32 %v875, %v1015
        %v1123 = vadd.f32 %v876, %v1017
        %v1124 = vadd.f32 %v877, %v1020
        %v1125 = vadd.f32 %v878, %v1022
        %v1126 = vadd.f32 %v879, %v1025
        %v1127 = vadd.f32 %v880, %v1027
        %v1128 = vadd.f32 %v881, %v1030
        %v1129 = vadd.f32 %v882, %v1032
        %v1130 = vadd.f32 %v883, %v1035
        %v1131 = vadd.f32 %v884, %v1037
        %v1132 = vadd.f32 %v885, %v1040
        %v1133 = vadd.f32 %v886, %v1042
        %v1134 = vadd.f32 %v887, %v1045
        %v1135 = vadd.f32 %v888, %v1047
        %v1136 = vadd.f32 %v889, %v1050
        %v1137 = vadd.f32 %v890, %v1052
        %v1138 = vadd.f32 %v891, %v1055
        %v1139 = vadd.f32 %v892, %v1057
        %v1140 = vadd.f32 %v893, %v1060
        %v1141 = vadd.f32 %v894, %v1062
        %v1142 = vadd.f32 %v895, %v1065
        %v1143 = vadd.f32 %v896, %v1067
        %v1144 = vadd.f32 %v897, %v1070
        %v1145 = vadd.f32 %v898, %v1072
        %v1146 = vadd.f32 %v899, %v1075
        %v1147 = vadd.f32 %v900, %v1077
        %v1148 = vadd.f32 %v901, %v1080
        %v1149 = vadd.f32 %v902, %v1082
        %v1150 = vadd.f32 %v903, %v1085
        %v1151 = vadd.f32 %v904, %v1087
        %v1153 = vlaneseq
        %v1154 = vshrl.u32 %v1153, 7
        %v1155 = vsub.s32 0, %v1154
        %v1156 = vrot.slane %v828, %v1155
        %v1158 = vmul.f32 %v772, %v1156
        %v1159 = vmul.f32 %v773, %v1156
        %v1160 = vmul.f32 %v774, %v1156
        %v1161 = vmul.f32 %v775, %v1156
        %v1162 = vmul.f32 %v776, %v1156
        %v1163 = vmul.f32 %v777, %v1156
        %v1164 = vmul.f32 %v778, %v1156
        %v1165 = vmul.f32 %v779, %v1156
        %v1166 = vmul.f32 %v780, %v1156
        %v1167 = vmul.f32 %v781, %v1156
        %v1168 = vmul.f32 %v782, %v1156
        %v1169 = vmul.f32 %v783, %v1156
        %v1170 = vmul.f32 %v784, %v1156
        %v1171 = vmul.f32 %v785, %v1156
        %v1172 = vmul.f32 %v786, %v1156
        %v1173 = vmul.f32 %v787, %v1156
        %v1174 = vmul.f32 %v788, %v1156
        %v1175 = vmul.f32 %v789, %v1156
        %v1176 = vmul.f32 %v790, %v1156
        %v1177 = vmul.f32 %v791, %v1156
        %v1178 = vmul.f32 %v792, %v1156
        %v1179 = vmul.f32 %v793, %v1156
        %v1180 = vmul.f32 %v794, %v1156
        %v1181 = vmul.f32 %v795, %v1156
        %v1182 = vmul.f32 %v796, %v1156
        %v1183 = vmul.f32 %v797, %v1156
        %v1184 = vmul.f32 %v798, %v1156
        %v1185 = vmul.f32 %v799, %v1156
        %v1186 = vmul.f32 %v800, %v1156
        %v1187 = vmul.f32 %v801, %v1156
        %v1188 = vmul.f32 %v802, %v1156
        %v1189 = vmul.f32 %v803, %v1156
        %v1190 = vmul.f32 %v804, %v1156
        %v1191 = vmul.f32 %v805, %v1156
        %v1192 = vmul.f32 %v806, %v1156
        %v1193 = vmul.f32 %v807, %v1156
        %v1194 = vmul.f32 %v808, %v1156
        %v1195 = vmul.f32 %v809, %v1156
        %v1196 = vmul.f32 %v810, %v1156
        %v1197 = vmul.f32 %v811, %v1156
        %v1198 = vmul.f32 %v812, %v1156
        %v1199 = vmul.f32 %v813, %v1156
        %v1200 = vmul.f32 %v814, %v1156
        %v1201 = vmul.f32 %v815, %v1156
        %v1202 = vmul.f32 %v816, %v1156
        %v1203 = vmul.f32 %v817, %v1156
        %v1204 = vmul.f32 %v818, %v1156
        %v1205 = vmul.f32 %v819, %v1156
        %vm1254 = vcmask 1045504
        %v1255 = vrot.slane %v1158, 2
        %v1256 = vrot.slane %v1159, 2
        %v1257 = vsel %vm1254, %v1255, %v1256
        %v1258 = vrot.slane %v1160, 2
        %v1259 = vsel %vm1254, %v1256, %v1258
        %v1260 = vrot.slane %v1161, 2
        %v1261 = vrot.slane %v1162, 2
        %v1262 = vsel %vm1254, %v1260, %v1261
        %v1263 = vrot.slane %v1163, 2
        %v1264 = vsel %vm1254, %v1261, %v1263
        %v1265 = vrot.slane %v1164, 2
        %v1266 = vrot.slane %v1165, 2
        %v1267 = vsel %vm1254, %v1265, %v1266
        %v1268 = vrot.slane %v1166, 2
        %v1269 = vsel %vm1254, %v1266, %v1268
        %v1270 = vrot.slane %v1167, 2
        %v1271 = vrot.slane %v1168, 2
        %v1272 = vsel %vm1254, %v1270, %v1271
        %v1273 = vrot.slane %v1169, 2
        %v1274 = vsel %vm1254, %v1271, %v1273
        %v1275 = vrot.slane %v1170, 2
        %v1276 = vrot.slane %v1171, 2
        %v1277 = vsel %vm1254, %v1275, %v1276
        %v1278 = vrot.slane %v1172, 2
        %v1279 = vsel %vm1254, %v1276, %v1278
        %v1280 = vrot.slane %v1173, 2
        %v1281 = vrot.slane %v1174, 2
        %v1282 = vsel %vm1254, %v1280, %v1281
        %v1283 = vrot.slane %v1175, 2
        %v1284 = vsel %vm1254, %v1281, %v1283
        %v1285 = vrot.slane %v1176, 2
        %v1286 = vrot.slane %v1177, 2
        %v1287 = vsel %vm1254, %v1285, %v1286
        %v1288 = vrot.slane %v1178, 2
        %v1289 = vsel %vm1254, %v1286, %v1288
        %v1290 = vrot.slane %v1179, 2
        %v1291 = vrot.slane %v1180, 2
        %v1292 = vsel %vm1254, %v1290, %v1291
        %v1293 = vrot.slane %v1181, 2
        %v1294 = vsel %vm1254, %v1291, %v1293
        %v1295 = vrot.slane %v1182, 2
        %v1296 = vrot.slane %v1183, 2
        %v1297 = vsel %vm1254, %v1295, %v1296
        %v1298 = vrot.slane %v1184, 2
        %v1299 = vsel %vm1254, %v1296, %v1298
        %v1300 = vrot.slane %v1185, 2
        %v1301 = vrot.slane %v1186, 2
        %v1302 = vsel %vm1254, %v1300, %v1301
        %v1303 = vrot.slane %v1187, 2
        %v1304 = vsel %vm1254, %v1301, %v1303
        %v1305 = vrot.slane %v1188, 2
        %v1306 = vrot.slane %v1189, 2
        %v1307 = vsel %vm1254, %v1305, %v1306
        %v1308 = vrot.slane %v1190, 2
        %v1309 = vsel %vm1254, %v1306, %v1308
        %v1310 = vrot.slane %v1191, 2
        %v1311 = vrot.slane %v1192, 2
        %v1312 = vsel %vm1254, %v1310, %v1311
        %v1313 = vrot.slane %v1193, 2
        %v1314 = vsel %vm1254, %v1311, %v1313
        %v1315 = vrot.slane %v1194, 2
        %v1316 = vrot.slane %v1195, 2
        %v1317 = vsel %vm1254, %v1315, %v1316
        %v1318 = vrot.slane %v1196, 2
        %v1319 = vsel %vm1254, %v1316, %v1318
        %v1320 = vrot.slane %v1197, 2
        %v1321 = vrot.slane %v1198, 2
        %v1322 = vsel %vm1254, %v1320, %v1321
        %v1323 = vrot.slane %v1199, 2
        %v1324 = vsel %vm1254, %v1321, %v1323
        %v1325 = vrot.slane %v1200, 2
        %v1326 = vrot.slane %v1201, 2
        %v1327 = vsel %vm1254, %v1325, %v1326
        %v1328 = vrot.slane %v1202, 2
        %v1329 = vsel %vm1254, %v1326, %v1328
        %v1330 = vrot.slane %v1203, 2
        %v1331 = vrot.slane %v1204, 2
        %v1332 = vsel %vm1254, %v1330, %v1331
        %v1333 = vrot.slane %v1205, 2
        %v1334 = vsel %vm1254, %v1331, %v1333
        %v1367 = vadd.f32 %v1120, %v1257
        %v1368 = vadd.f32 %v1121, %v1259
        %v1369 = vadd.f32 %v1122, %v1262
        %v1370 = vadd.f32 %v1123, %v1264
        %v1371 = vadd.f32 %v1124, %v1267
        %v1372 = vadd.f32 %v1125, %v1269
        %v1373 = vadd.f32 %v1126, %v1272
        %v1374 = vadd.f32 %v1127, %v1274
        %v1375 = vadd.f32 %v1128, %v1277
        %v1376 = vadd.f32 %v1129, %v1279
        %v1377 = vadd.f32 %v1130, %v1282
        %v1378 = vadd.f32 %v1131, %v1284
        %v1379 = vadd.f32 %v1132, %v1287
        %v1380 = vadd.f32 %v1133, %v1289
        %v1381 = vadd.f32 %v1134, %v1292
        %v1382 = vadd.f32 %v1135, %v1294
        %v1383 = vadd.f32 %v1136, %v1297
        %v1384 = vadd.f32 %v1137, %v1299
        %v1385 = vadd.f32 %v1138, %v1302
        %v1386 = vadd.f32 %v1139, %v1304
        %v1387 = vadd.f32 %v1140, %v1307
        %v1388 = vadd.f32 %v1141, %v1309
        %v1389 = vadd.f32 %v1142, %v1312
        %v1390 = vadd.f32 %v1143, %v1314
        %v1391 = vadd.f32 %v1144, %v1317
        %v1392 = vadd.f32 %v1145, %v1319
        %v1393 = vadd.f32 %v1146, %v1322
        %v1394 = vadd.f32 %v1147, %v1324
        %v1395 = vadd.f32 %v1148, %v1327
        %v1396 = vadd.f32 %v1149, %v1329
        %v1397 = vadd.f32 %v1150, %v1332
        %v1398 = vadd.f32 %v1151, %v1334
        %v1400 = vlaneseq
        %v1401 = vshrl.u32 %v1400, 7
        %v1402 = vsub.s32 0, %v1401
        %v1403 = vrot.slane %v829, %v1402
        %v1405 = vmul.f32 %v775, %v1403
        %v1406 = vmul.f32 %v776, %v1403
        %v1407 = vmul.f32 %v778, %v1403
        %v1408 = vmul.f32 %v779, %v1403
        %v1409 = vmul.f32 %v781, %v1403
        %v1410 = vmul.f32 %v782, %v1403
        %v1411 = vmul.f32 %v784, %v1403
        %v1412 = vmul.f32 %v785, %v1403
        %v1413 = vmul.f32 %v787, %v1403
        %v1414 = vmul.f32 %v788, %v1403
        %v1415 = vmul.f32 %v790, %v1403
        %v1416 = vmul.f32 %v791, %v1403
        %v1417 = vmul.f32 %v793, %v1403
        %v1418 = vmul.f32 %v794, %v1403
        %v1419 = vmul.f32 %v796, %v1403
        %v1420 = vmul.f32 %v797, %v1403
        %v1421 = vmul.f32 %v799, %v1403
        %v1422 = vmul.f32 %v800, %v1403
        %v1423 = vmul.f32 %v802, %v1403
        %v1424 = vmul.f32 %v803, %v1403
        %v1425 = vmul.f32 %v805, %v1403
        %v1426 = vmul.f32 %v806, %v1403
        %v1427 = vmul.f32 %v808, %v1403
        %v1428 = vmul.f32 %v809, %v1403
        %v1429 = vmul.f32 %v811, %v1403
        %v1430 = vmul.f32 %v812, %v1403
        %v1431 = vmul.f32 %v814, %v1403
        %v1432 = vmul.f32 %v815, %v1403
        %v1433 = vmul.f32 %v817, %v1403
        %v1434 = vmul.f32 %v818, %v1403
        %v1435 = vmul.f32 %v820, %v1403
        %v1436 = vmul.f32 %v821, %v1403
        %v1437 = vadd.f32 %v1367, %v1405
        %v1438 = vadd.f32 %v1368, %v1406
        %v1439 = vadd.f32 %v1369, %v1407
        %v1440 = vadd.f32 %v1370, %v1408
        %v1441 = vadd.f32 %v1371, %v1409
        %v1442 = vadd.f32 %v1372, %v1410
        %v1443 = vadd.f32 %v1373, %v1411
        %v1444 = vadd.f32 %v1374, %v1412
        %v1445 = vadd.f32 %v1375, %v1413
        %v1446 = vadd.f32 %v1376, %v1414
        %v1447 = vadd.f32 %v1377, %v1415
        %v1448 = vadd.f32 %v1378, %v1416
        %v1449 = vadd.f32 %v1379, %v1417
        %v1450 = vadd.f32 %v1380, %v1418
        %v1451 = vadd.f32 %v1381, %v1419
        %v1452 = vadd.f32 %v1382, %v1420
        %v1453 = vadd.f32 %v1383, %v1421
        %v1454 = vadd.f32 %v1384, %v1422
        %v1455 = vadd.f32 %v1385, %v1423
        %v1456 = vadd.f32 %v1386, %v1424
        %v1457 = vadd.f32 %v1387, %v1425
        %v1458 = vadd.f32 %v1388, %v1426
        %v1459 = vadd.f32 %v1389, %v1427
        %v1460 = vadd.f32 %v1390, %v1428
        %v1461 = vadd.f32 %v1391, %v1429
        %v1462 = vadd.f32 %v1392, %v1430
        %v1463 = vadd.f32 %v1393, %v1431
        %v1464 = vadd.f32 %v1394, %v1432
        %v1465 = vadd.f32 %v1395, %v1433
        %v1466 = vadd.f32 %v1396, %v1434
        %v1467 = vadd.f32 %v1397, %v1435
        %v1468 = vadd.f32 %v1398, %v1436
        %v1470 = vlaneseq
        %v1471 = vshrl.u32 %v1470, 7
        %v1472 = vsub.s32 0, %v1471
        %v1473 = vrot.slane %v830, %v1472
        %v1475 = vmul.f32 %v775, %v1473
        %v1476 = vmul.f32 %v776, %v1473
        %v1477 = vmul.f32 %v777, %v1473
        %v1478 = vmul.f32 %v778, %v1473
        %v1479 = vmul.f32 %v779, %v1473
        %v1480 = vmul.f32 %v780, %v1473
        %v1481 = vmul.f32 %v781, %v1473
        %v1482 = vmul.f32 %v782, %v1473
        %v1483 = vmul.f32 %v783, %v1473
        %v1484 = vmul.f32 %v784, %v1473
        %v1485 = vmul.f32 %v785, %v1473
        %v1486 = vmul.f32 %v786, %v1473
        %v1487 = vmul.f32 %v787, %v1473
        %v1488 = vmul.f32 %v788, %v1473
        %v1489 = vmul.f32 %v789, %v1473
        %v1490 = vmul.f32 %v790, %v1473
        %v1491 = vmul.f32 %v791, %v1473
        %v1492 = vmul.f32 %v792, %v1473
        %v1493 = vmul.f32 %v793, %v1473
        %v1494 = vmul.f32 %v794, %v1473
        %v1495 = vmul.f32 %v795, %v1473
        %v1496 = vmul.f32 %v796, %v1473
        %v1497 = vmul.f32 %v797, %v1473
        %v1498 = vmul.f32 %v798, %v1473
        %v1499 = vmul.f32 %v799, %v1473
        %v1500 = vmul.f32 %v800, %v1473
        %v1501 = vmul.f32 %v801, %v1473
        %v1502 = vmul.f32 %v802, %v1473
        %v1503 = vmul.f32 %v803, %v1473
        %v1504 = vmul.f32 %v804, %v1473
        %v1505 = vmul.f32 %v805, %v1473
        %v1506 = vmul.f32 %v806, %v1473
        %v1507 = vmul.f32 %v807, %v1473
        %v1508 = vmul.f32 %v808, %v1473
        %v1509 = vmul.f32 %v809, %v1473
        %v1510 = vmul.f32 %v810, %v1473
        %v1511 = vmul.f32 %v811, %v1473
        %v1512 = vmul.f32 %v812, %v1473
        %v1513 = vmul.f32 %v813, %v1473
        %v1514 = vmul.f32 %v814, %v1473
        %v1515 = vmul.f32 %v815, %v1473
        %v1516 = vmul.f32 %v816, %v1473
        %v1517 = vmul.f32 %v817, %v1473
        %v1518 = vmul.f32 %v818, %v1473
        %v1519 = vmul.f32 %v819, %v1473
        %v1520 = vmul.f32 %v820, %v1473
        %v1521 = vmul.f32 %v821, %v1473
        %v1522 = vmul.f32 %v822, %v1473
        %v1571 = vrot.slane %v1475, 1
        %v1572 = vrot.slane %v1476, 1
        %v1573 = vsel %vm1007, %v1571, %v1572
        %v1574 = vrot.slane %v1477, 1
        %v1575 = vsel %vm1007, %v1572, %v1574
        %v1576 = vrot.slane %v1478, 1
        %v1577 = vrot.slane %v1479, 1
        %v1578 = vsel %vm1007, %v1576, %v1577
        %v1579 = vrot.slane %v1480, 1
        %v1580 = vsel %vm1007, %v1577, %v1579
        %v1581 = vrot.slane %v1481, 1
        %v1582 = vrot.slane %v1482, 1
        %v1583 = vsel %vm1007, %v1581, %v1582
        %v1584 = vrot.slane %v1483, 1
        %v1585 = vsel %vm1007, %v1582, %v1584
        %v1586 = vrot.slane %v1484, 1
        %v1587 = vrot.slane %v1485, 1
        %v1588 = vsel %vm1007, %v1586, %v1587
        %v1589 = vrot.slane %v1486, 1
        %v1590 = vsel %vm1007, %v1587, %v1589
        %v1591 = vrot.slane %v1487, 1
        %v1592 = vrot.slane %v1488, 1
        %v1593 = vsel %vm1007, %v1591, %v1592
        %v1594 = vrot.slane %v1489, 1
        %v1595 = vsel %vm1007, %v1592, %v1594
        %v1596 = vrot.slane %v1490, 1
        %v1597 = vrot.slane %v1491, 1
        %v1598 = vsel %vm1007, %v1596, %v1597
        %v1599 = vrot.slane %v1492, 1
        %v1600 = vsel %vm1007, %v1597, %v1599
        %v1601 = vrot.slane %v1493, 1
        %v1602 = vrot.slane %v1494, 1
        %v1603 = vsel %vm1007, %v1601, %v1602
        %v1604 = vrot.slane %v1495, 1
        %v1605 = vsel %vm1007, %v1602, %v1604
        %v1606 = vrot.slane %v1496, 1
        %v1607 = vrot.slane %v1497, 1
        %v1608 = vsel %vm1007, %v1606, %v1607
        %v1609 = vrot.slane %v1498, 1
        %v1610 = vsel %vm1007, %v1607, %v1609
        %v1611 = vrot.slane %v1499, 1
        %v1612 = vrot.slane %v1500, 1
        %v1613 = vsel %vm1007, %v1611, %v1612
        %v1614 = vrot.slane %v1501, 1
        %v1615 = vsel %vm1007, %v1612, %v1614
        %v1616 = vrot.slane %v1502, 1
        %v1617 = vrot.slane %v1503, 1
        %v1618 = vsel %vm1007, %v1616, %v1617
        %v1619 = vrot.slane %v1504, 1
        %v1620 = vsel %vm1007, %v1617, %v1619
        %v1621 = vrot.slane %v1505, 1
        %v1622 = vrot.slane %v1506, 1
        %v1623 = vsel %vm1007, %v1621, %v1622
        %v1624 = vrot.slane %v1507, 1
        %v1625 = vsel %vm1007, %v1622, %v1624
        %v1626 = vrot.slane %v1508, 1
        %v1627 = vrot.slane %v1509, 1
        %v1628 = vsel %vm1007, %v1626, %v1627
        %v1629 = vrot.slane %v1510, 1
        %v1630 = vsel %vm1007, %v1627, %v1629
        %v1631 = vrot.slane %v1511, 1
        %v1632 = vrot.slane %v1512, 1
        %v1633 = vsel %vm1007, %v1631, %v1632
        %v1634 = vrot.slane %v1513, 1
        %v1635 = vsel %vm1007, %v1632, %v1634
        %v1636 = vrot.slane %v1514, 1
        %v1637 = vrot.slane %v1515, 1
        %v1638 = vsel %vm1007, %v1636, %v1637
        %v1639 = vrot.slane %v1516, 1
        %v1640 = vsel %vm1007, %v1637, %v1639
        %v1641 = vrot.slane %v1517, 1
        %v1642 = vrot.slane %v1518, 1
        %v1643 = vsel %vm1007, %v1641, %v1642
        %v1644 = vrot.slane %v1519, 1
        %v1645 = vsel %vm1007, %v1642, %v1644
        %v1646 = vrot.slane %v1520, 1
        %v1647 = vrot.slane %v1521, 1
        %v1648 = vsel %vm1007, %v1646, %v1647
        %v1649 = vrot.slane %v1522, 1
        %v1650 = vsel %vm1007, %v1647, %v1649
        %v1683 = vadd.f32 %v1437, %v1573
        %v1684 = vadd.f32 %v1438, %v1575
        %v1685 = vadd.f32 %v1439, %v1578
        %v1686 = vadd.f32 %v1440, %v1580
        %v1687 = vadd.f32 %v1441, %v1583
        %v1688 = vadd.f32 %v1442, %v1585
        %v1689 = vadd.f32 %v1443, %v1588
        %v1690 = vadd.f32 %v1444, %v1590
        %v1691 = vadd.f32 %v1445, %v1593
        %v1692 = vadd.f32 %v1446, %v1595
        %v1693 = vadd.f32 %v1447, %v1598
        %v1694 = vadd.f32 %v1448, %v1600
        %v1695 = vadd.f32 %v1449, %v1603
        %v1696 = vadd.f32 %v1450, %v1605
        %v1697 = vadd.f32 %v1451, %v1608
        %v1698 = vadd.f32 %v1452, %v1610
        %v1699 = vadd.f32 %v1453, %v1613
        %v1700 = vadd.f32 %v1454, %v1615
        %v1701 = vadd.f32 %v1455, %v1618
        %v1702 = vadd.f32 %v1456, %v1620
        %v1703 = vadd.f32 %v1457, %v1623
        %v1704 = vadd.f32 %v1458, %v1625
        %v1705 = vadd.f32 %v1459, %v1628
        %v1706 = vadd.f32 %v1460, %v1630
        %v1707 = vadd.f32 %v1461, %v1633
        %v1708 = vadd.f32 %v1462, %v1635
        %v1709 = vadd.f32 %v1463, %v1638
        %v1710 = vadd.f32 %v1464, %v1640
        %v1711 = vadd.f32 %v1465, %v1643
        %v1712 = vadd.f32 %v1466, %v1645
        %v1713 = vadd.f32 %v1467, %v1648
        %v1714 = vadd.f32 %v1468, %v1650
        %v1716 = vlaneseq
        %v1717 = vshrl.u32 %v1716, 7
        %v1718 = vsub.s32 0, %v1717
        %v1719 = vrot.slane %v831, %v1718
        %v1721 = vmul.f32 %v775, %v1719
        %v1722 = vmul.f32 %v776, %v1719
        %v1723 = vmul.f32 %v777, %v1719
        %v1724 = vmul.f32 %v778, %v1719
        %v1725 = vmul.f32 %v779, %v1719
        %v1726 = vmul.f32 %v780, %v1719
        %v1727 = vmul.f32 %v781, %v1719
        %v1728 = vmul.f32 %v782, %v1719
        %v1729 = vmul.f32 %v783, %v1719
        %v1730 = vmul.f32 %v784, %v1719
        %v1731 = vmul.f32 %v785, %v1719
        %v1732 = vmul.f32 %v786, %v1719
        %v1733 = vmul.f32 %v787, %v1719
        %v1734 = vmul.f32 %v788, %v1719
        %v1735 = vmul.f32 %v789, %v1719
        %v1736 = vmul.f32 %v790, %v1719
        %v1737 = vmul.f32 %v791, %v1719
        %v1738 = vmul.f32 %v792, %v1719
        %v1739 = vmul.f32 %v793, %v1719
        %v1740 = vmul.f32 %v794, %v1719
        %v1741 = vmul.f32 %v795, %v1719
        %v1742 = vmul.f32 %v796, %v1719
        %v1743 = vmul.f32 %v797, %v1719
        %v1744 = vmul.f32 %v798, %v1719
        %v1745 = vmul.f32 %v799, %v1719
        %v1746 = vmul.f32 %v800, %v1719
        %v1747 = vmul.f32 %v801, %v1719
        %v1748 = vmul.f32 %v802, %v1719
        %v1749 = vmul.f32 %v803, %v1719
        %v1750 = vmul.f32 %v804, %v1719
        %v1751 = vmul.f32 %v805, %v1719
        %v1752 = vmul.f32 %v806, %v1719
        %v1753 = vmul.f32 %v807, %v1719
        %v1754 = vmul.f32 %v808, %v1719
        %v1755 = vmul.f32 %v809, %v1719
        %v1756 = vmul.f32 %v810, %v1719
        %v1757 = vmul.f32 %v811, %v1719
        %v1758 = vmul.f32 %v812, %v1719
        %v1759 = vmul.f32 %v813, %v1719
        %v1760 = vmul.f32 %v814, %v1719
        %v1761 = vmul.f32 %v815, %v1719
        %v1762 = vmul.f32 %v816, %v1719
        %v1763 = vmul.f32 %v817, %v1719
        %v1764 = vmul.f32 %v818, %v1719
        %v1765 = vmul.f32 %v819, %v1719
        %v1766 = vmul.f32 %v820, %v1719
        %v1767 = vmul.f32 %v821, %v1719
        %v1768 = vmul.f32 %v822, %v1719
        %v1817 = vrot.slane %v1721, 2
        %v1818 = vrot.slane %v1722, 2
        %v1819 = vsel %vm1254, %v1817, %v1818
        %v1820 = vrot.slane %v1723, 2
        %v1821 = vsel %vm1254, %v1818, %v1820
        %v1822 = vrot.slane %v1724, 2
        %v1823 = vrot.slane %v1725, 2
        %v1824 = vsel %vm1254, %v1822, %v1823
        %v1825 = vrot.slane %v1726, 2
        %v1826 = vsel %vm1254, %v1823, %v1825
        %v1827 = vrot.slane %v1727, 2
        %v1828 = vrot.slane %v1728, 2
        %v1829 = vsel %vm1254, %v1827, %v1828
        %v1830 = vrot.slane %v1729, 2
        %v1831 = vsel %vm1254, %v1828, %v1830
        %v1832 = vrot.slane %v1730, 2
        %v1833 = vrot.slane %v1731, 2
        %v1834 = vsel %vm1254, %v1832, %v1833
        %v1835 = vrot.slane %v1732, 2
        %v1836 = vsel %vm1254, %v1833, %v1835
        %v1837 = vrot.slane %v1733, 2
        %v1838 = vrot.slane %v1734, 2
        %v1839 = vsel %vm1254, %v1837, %v1838
        %v1840 = vrot.slane %v1735, 2
        %v1841 = vsel %vm1254, %v1838, %v1840
        %v1842 = vrot.slane %v1736, 2
        %v1843 = vrot.slane %v1737, 2
        %v1844 = vsel %vm1254, %v1842, %v1843
        %v1845 = vrot.slane %v1738, 2
        %v1846 = vsel %vm1254, %v1843, %v1845
        %v1847 = vrot.slane %v1739, 2
        %v1848 = vrot.slane %v1740, 2
        %v1849 = vsel %vm1254, %v1847, %v1848
        %v1850 = vrot.slane %v1741, 2
        %v1851 = vsel %vm1254, %v1848, %v1850
        %v1852 = vrot.slane %v1742, 2
        %v1853 = vrot.slane %v1743, 2
        %v1854 = vsel %vm1254, %v1852, %v1853
        %v1855 = vrot.slane %v1744, 2
        %v1856 = vsel %vm1254, %v1853, %v1855
        %v1857 = vrot.slane %v1745, 2
        %v1858 = vrot.slane %v1746, 2
        %v1859 = vsel %vm1254, %v1857, %v1858
        %v1860 = vrot.slane %v1747, 2
        %v1861 = vsel %vm1254, %v1858, %v1860
        %v1862 = vrot.slane %v1748, 2
        %v1863 = vrot.slane %v1749, 2
        %v1864 = vsel %vm1254, %v1862, %v1863
        %v1865 = vrot.slane %v1750, 2
        %v1866 = vsel %vm1254, %v1863, %v1865
        %v1867 = vrot.slane %v1751, 2
        %v1868 = vrot.slane %v1752, 2
        %v1869 = vsel %vm1254, %v1867, %v1868
        %v1870 = vrot.slane %v1753, 2
        %v1871 = vsel %vm1254, %v1868, %v1870
        %v1872 = vrot.slane %v1754, 2
        %v1873 = vrot.slane %v1755, 2
        %v1874 = vsel %vm1254, %v1872, %v1873
        %v1875 = vrot.slane %v1756, 2
        %v1876 = vsel %vm1254, %v1873, %v1875
        %v1877 = vrot.slane %v1757, 2
        %v1878 = vrot.slane %v1758, 2
        %v1879 = vsel %vm1254, %v1877, %v1878
        %v1880 = vrot.slane %v1759, 2
        %v1881 = vsel %vm1254, %v1878, %v1880
        %v1882 = vrot.slane %v1760, 2
        %v1883 = vrot.slane %v1761, 2
        %v1884 = vsel %vm1254, %v1882, %v1883
        %v1885 = vrot.slane %v1762, 2
        %v1886 = vsel %vm1254, %v1883, %v1885
        %v1887 = vrot.slane %v1763, 2
        %v1888 = vrot.slane %v1764, 2
        %v1889 = vsel %vm1254, %v1887, %v1888
        %v1890 = vrot.slane %v1765, 2
        %v1891 = vsel %vm1254, %v1888, %v1890
        %v1892 = vrot.slane %v1766, 2
        %v1893 = vrot.slane %v1767, 2
        %v1894 = vsel %vm1254, %v1892, %v1893
        %v1895 = vrot.slane %v1768, 2
        %v1896 = vsel %vm1254, %v1893, %v1895
        %v1929 = vadd.f32 %v1683, %v1819
        %v1930 = vadd.f32 %v1684, %v1821
        %v1931 = vadd.f32 %v1685, %v1824
        %v1932 = vadd.f32 %v1686, %v1826
        %v1933 = vadd.f32 %v1687, %v1829
        %v1934 = vadd.f32 %v1688, %v1831
        %v1935 = vadd.f32 %v1689, %v1834
        %v1936 = vadd.f32 %v1690, %v1836
        %v1937 = vadd.f32 %v1691, %v1839
        %v1938 = vadd.f32 %v1692, %v1841
        %v1939 = vadd.f32 %v1693, %v1844
        %v1940 = vadd.f32 %v1694, %v1846
        %v1941 = vadd.f32 %v1695, %v1849
        %v1942 = vadd.f32 %v1696, %v1851
        %v1943 = vadd.f32 %v1697, %v1854
        %v1944 = vadd.f32 %v1698, %v1856
        %v1945 = vadd.f32 %v1699, %v1859
        %v1946 = vadd.f32 %v1700, %v1861
        %v1947 = vadd.f32 %v1701, %v1864
        %v1948 = vadd.f32 %v1702, %v1866
        %v1949 = vadd.f32 %v1703, %v1869
        %v1950 = vadd.f32 %v1704, %v1871
        %v1951 = vadd.f32 %v1705, %v1874
        %v1952 = vadd.f32 %v1706, %v1876
        %v1953 = vadd.f32 %v1707, %v1879
        %v1954 = vadd.f32 %v1708, %v1881
        %v1955 = vadd.f32 %v1709, %v1884
        %v1956 = vadd.f32 %v1710, %v1886
        %v1957 = vadd.f32 %v1711, %v1889
        %v1958 = vadd.f32 %v1712, %v1891
        %v1959 = vadd.f32 %v1713, %v1894
        %v1960 = vadd.f32 %v1714, %v1896
        %v1962 = vlaneseq
        %v1963 = vshrl.u32 %v1962, 7
        %v1964 = vsub.s32 0, %v1963
        %v1965 = vrot.slane %v832, %v1964
        %v1967 = vmul.f32 %v778, %v1965
        %v1968 = vmul.f32 %v779, %v1965
        %v1969 = vmul.f32 %v781, %v1965
        %v1970 = vmul.f32 %v782, %v1965
        %v1971 = vmul.f32 %v784, %v1965
        %v1972 = vmul.f32 %v785, %v1965
        %v1973 = vmul.f32 %v787, %v1965
        %v1974 = vmul.f32 %v788, %v1965
        %v1975 = vmul.f32 %v790, %v1965
        %v1976 = vmul.f32 %v791, %v1965
        %v1977 = vmul.f32 %v793, %v1965
        %v1978 = vmul.f32 %v794, %v1965
        %v1979 = vmul.f32 %v796, %v1965
        %v1980 = vmul.f32 %v797, %v1965
        %v1981 = vmul.f32 %v799, %v1965
        %v1982 = vmul.f32 %v800, %v1965
        %v1983 = vmul.f32 %v802, %v1965
        %v1984 = vmul.f32 %v803, %v1965
        %v1985 = vmul.f32 %v805, %v1965
        %v1986 = vmul.f32 %v806, %v1965
        %v1987 = vmul.f32 %v808, %v1965
        %v1988 = vmul.f32 %v809, %v1965
        %v1989 = vmul.f32 %v811, %v1965
        %v1990 = vmul.f32 %v812, %v1965
        %v1991 = vmul.f32 %v814, %v1965
        %v1992 = vmul.f32 %v815, %v1965
        %v1993 = vmul.f32 %v817, %v1965
        %v1994 = vmul.f32 %v818, %v1965
        %v1995 = vmul.f32 %v820, %v1965
        %v1996 = vmul.f32 %v821, %v1965
        %v1997 = vmul.f32 %v823, %v1965
        %v1998 = vmul.f32 %v824, %v1965
        %v1999 = vadd.f32 %v1929, %v1967
        %v2000 = vadd.f32 %v1930, %v1968
        %v2001 = vadd.f32 %v1931, %v1969
        %v2002 = vadd.f32 %v1932, %v1970
        %v2003 = vadd.f32 %v1933, %v1971
        %v2004 = vadd.f32 %v1934, %v1972
        %v2005 = vadd.f32 %v1935, %v1973
        %v2006 = vadd.f32 %v1936, %v1974
        %v2007 = vadd.f32 %v1937, %v1975
        %v2008 = vadd.f32 %v1938, %v1976
        %v2009 = vadd.f32 %v1939, %v1977
        %v2010 = vadd.f32 %v1940, %v1978
        %v2011 = vadd.f32 %v1941, %v1979
        %v2012 = vadd.f32 %v1942, %v1980
        %v2013 = vadd.f32 %v1943, %v1981
        %v2014 = vadd.f32 %v1944, %v1982
        %v2015 = vadd.f32 %v1945, %v1983
        %v2016 = vadd.f32 %v1946, %v1984
        %v2017 = vadd.f32 %v1947, %v1985
        %v2018 = vadd.f32 %v1948, %v1986
        %v2019 = vadd.f32 %v1949, %v1987
        %v2020 = vadd.f32 %v1950, %v1988
        %v2021 = vadd.f32 %v1951, %v1989
        %v2022 = vadd.f32 %v1952, %v1990
        %v2023 = vadd.f32 %v1953, %v1991
        %v2024 = vadd.f32 %v1954, %v1992
        %v2025 = vadd.f32 %v1955, %v1993
        %v2026 = vadd.f32 %v1956, %v1994
        %v2027 = vadd.f32 %v1957, %v1995
        %v2028 = vadd.f32 %v1958, %v1996
        %v2029 = vadd.f32 %v1959, %v1997
        %v2030 = vadd.f32 %v1960, %v1998
        %v2032 = vlaneseq
        %v2033 = vshrl.u32 %v2032, 7
        %v2034 = vsub.s32 0, %v2033
        %v2035 = vrot.slane %v833, %v2034
        %v2037 = vmul.f32 %v778, %v2035
        %v2038 = vmul.f32 %v779, %v2035
        %v2039 = vmul.f32 %v780, %v2035
        %v2040 = vmul.f32 %v781, %v2035
        %v2041 = vmul.f32 %v782, %v2035
        %v2042 = vmul.f32 %v783, %v2035
        %v2043 = vmul.f32 %v784, %v2035
        %v2044 = vmul.f32 %v785, %v2035
        %v2045 = vmul.f32 %v786, %v2035
        %v2046 = vmul.f32 %v787, %v2035
        %v2047 = vmul.f32 %v788, %v2035
        %v2048 = vmul.f32 %v789, %v2035
        %v2049 = vmul.f32 %v790, %v2035
        %v2050 = vmul.f32 %v791, %v2035
        %v2051 = vmul.f32 %v792, %v2035
        %v2052 = vmul.f32 %v793, %v2035
        %v2053 = vmul.f32 %v794, %v2035
        %v2054 = vmul.f32 %v795, %v2035
        %v2055 = vmul.f32 %v796, %v2035
        %v2056 = vmul.f32 %v797, %v2035
        %v2057 = vmul.f32 %v798, %v2035
        %v2058 = vmul.f32 %v799, %v2035
        %v2059 = vmul.f32 %v800, %v2035
        %v2060 = vmul.f32 %v801, %v2035
        %v2061 = vmul.f32 %v802, %v2035
        %v2062 = vmul.f32 %v803, %v2035
        %v2063 = vmul.f32 %v804, %v2035
        %v2064 = vmul.f32 %v805, %v2035
        %v2065 = vmul.f32 %v806, %v2035
        %v2066 = vmul.f32 %v807, %v2035
        %v2067 = vmul.f32 %v808, %v2035
        %v2068 = vmul.f32 %v809, %v2035
        %v2069 = vmul.f32 %v810, %v2035
        %v2070 = vmul.f32 %v811, %v2035
        %v2071 = vmul.f32 %v812, %v2035
        %v2072 = vmul.f32 %v813, %v2035
        %v2073 = vmul.f32 %v814, %v2035
        %v2074 = vmul.f32 %v815, %v2035
        %v2075 = vmul.f32 %v816, %v2035
        %v2076 = vmul.f32 %v817, %v2035
        %v2077 = vmul.f32 %v818, %v2035
        %v2078 = vmul.f32 %v819, %v2035
        %v2079 = vmul.f32 %v820, %v2035
        %v2080 = vmul.f32 %v821, %v2035
        %v2081 = vmul.f32 %v822, %v2035
        %v2082 = vmul.f32 %v823, %v2035
        %v2083 = vmul.f32 %v824, %v2035
        %v2084 = vmul.f32 %v825, %v2035
        %v2133 = vrot.slane %v2037, 1
        %v2134 = vrot.slane %v2038, 1
        %v2135 = vsel %vm1007, %v2133, %v2134
        %v2136 = vrot.slane %v2039, 1
        %v2137 = vsel %vm1007, %v2134, %v2136
        %v2138 = vrot.slane %v2040, 1
        %v2139 = vrot.slane %v2041, 1
        %v2140 = vsel %vm1007, %v2138, %v2139
        %v2141 = vrot.slane %v2042, 1
        %v2142 = vsel %vm1007, %v2139, %v2141
        %v2143 = vrot.slane %v2043, 1
        %v2144 = vrot.slane %v2044, 1
        %v2145 = vsel %vm1007, %v2143, %v2144
        %v2146 = vrot.slane %v2045, 1
        %v2147 = vsel %vm1007, %v2144, %v2146
        %v2148 = vrot.slane %v2046, 1
        %v2149 = vrot.slane %v2047, 1
        %v2150 = vsel %vm1007, %v2148, %v2149
        %v2151 = vrot.slane %v2048, 1
        %v2152 = vsel %vm1007, %v2149, %v2151
        %v2153 = vrot.slane %v2049, 1
        %v2154 = vrot.slane %v2050, 1
        %v2155 = vsel %vm1007, %v2153, %v2154
        %v2156 = vrot.slane %v2051, 1
        %v2157 = vsel %vm1007, %v2154, %v2156
        %v2158 = vrot.slane %v2052, 1
        %v2159 = vrot.slane %v2053, 1
        %v2160 = vsel %vm1007, %v2158, %v2159
        %v2161 = vrot.slane %v2054, 1
        %v2162 = vsel %vm1007, %v2159, %v2161
        %v2163 = vrot.slane %v2055, 1
        %v2164 = vrot.slane %v2056, 1
        %v2165 = vsel %vm1007, %v2163, %v2164
        %v2166 = vrot.slane %v2057, 1
        %v2167 = vsel %vm1007, %v2164, %v2166
        %v2168 = vrot.slane %v2058, 1
        %v2169 = vrot.slane %v2059, 1
        %v2170 = vsel %vm1007, %v2168, %v2169
        %v2171 = vrot.slane %v2060, 1
        %v2172 = vsel %vm1007, %v2169, %v2171
        %v2173 = vrot.slane %v2061, 1
        %v2174 = vrot.slane %v2062, 1
        %v2175 = vsel %vm1007, %v2173, %v2174
        %v2176 = vrot.slane %v2063, 1
        %v2177 = vsel %vm1007, %v2174, %v2176
        %v2178 = vrot.slane %v2064, 1
        %v2179 = vrot.slane %v2065, 1
        %v2180 = vsel %vm1007, %v2178, %v2179
        %v2181 = vrot.slane %v2066, 1
        %v2182 = vsel %vm1007, %v2179, %v2181
        %v2183 = vrot.slane %v2067, 1
        %v2184 = vrot.slane %v2068, 1
        %v2185 = vsel %vm1007, %v2183, %v2184
        %v2186 = vrot.slane %v2069, 1
        %v2187 = vsel %vm1007, %v2184, %v2186
        %v2188 = vrot.slane %v2070, 1
        %v2189 = vrot.slane %v2071, 1
        %v2190 = vsel %vm1007, %v2188, %v2189
        %v2191 = vrot.slane %v2072, 1
        %v2192 = vsel %vm1007, %v2189, %v2191
        %v2193 = vrot.slane %v2073, 1
        %v2194 = vrot.slane %v2074, 1
        %v2195 = vsel %vm1007, %v2193, %v2194
        %v2196 = vrot.slane %v2075, 1
        %v2197 = vsel %vm1007, %v2194, %v2196
        %v2198 = vrot.slane %v2076, 1
        %v2199 = vrot.slane %v2077, 1
        %v2200 = vsel %vm1007, %v2198, %v2199
        %v2201 = vrot.slane %v2078, 1
        %v2202 = vsel %vm1007, %v2199, %v2201
        %v2203 = vrot.slane %v2079, 1
        %v2204 = vrot.slane %v2080, 1
        %v2205 = vsel %vm1007, %v2203, %v2204
        %v2206 = vrot.slane %v2081, 1
        %v2207 = vsel %vm1007, %v2204, %v2206
        %v2208 = vrot.slane %v2082, 1
        %v2209 = vrot.slane %v2083, 1
        %v2210 = vsel %vm1007, %v2208, %v2209
        %v2211 = vrot.slane %v2084, 1
        %v2212 = vsel %vm1007, %v2209, %v2211
        %v2245 = vadd.f32 %v1999, %v2135
        %v2246 = vadd.f32 %v2000, %v2137
        %v2247 = vadd.f32 %v2001, %v2140
        %v2248 = vadd.f32 %v2002, %v2142
        %v2249 = vadd.f32 %v2003, %v2145
        %v2250 = vadd.f32 %v2004, %v2147
        %v2251 = vadd.f32 %v2005, %v2150
        %v2252 = vadd.f32 %v2006, %v2152
        %v2253 = vadd.f32 %v2007, %v2155
        %v2254 = vadd.f32 %v2008, %v2157
        %v2255 = vadd.f32 %v2009, %v2160
        %v2256 = vadd.f32 %v2010, %v2162
        %v2257 = vadd.f32 %v2011, %v2165
        %v2258 = vadd.f32 %v2012, %v2167
        %v2259 = vadd.f32 %v2013, %v2170
        %v2260 = vadd.f32 %v2014, %v2172
        %v2261 = vadd.f32 %v2015, %v2175
        %v2262 = vadd.f32 %v2016, %v2177
        %v2263 = vadd.f32 %v2017, %v2180
        %v2264 = vadd.f32 %v2018, %v2182
        %v2265 = vadd.f32 %v2019, %v2185
        %v2266 = vadd.f32 %v2020, %v2187
        %v2267 = vadd.f32 %v2021, %v2190
        %v2268 = vadd.f32 %v2022, %v2192
        %v2269 = vadd.f32 %v2023, %v2195
        %v2270 = vadd.f32 %v2024, %v2197
        %v2271 = vadd.f32 %v2025, %v2200
        %v2272 = vadd.f32 %v2026, %v2202
        %v2273 = vadd.f32 %v2027, %v2205
        %v2274 = vadd.f32 %v2028, %v2207
        %v2275 = vadd.f32 %v2029, %v2210
        %v2276 = vadd.f32 %v2030, %v2212
        %v2278 = vlaneseq
        %v2279 = vshrl.u32 %v2278, 7
        %v2280 = vsub.s32 0, %v2279
        %v2281 = vrot.slane %v834, %v2280
        %v2283 = vmul.f32 %v778, %v2281
        %v2284 = vmul.f32 %v779, %v2281
        %v2285 = vmul.f32 %v780, %v2281
        %v2286 = vmul.f32 %v781, %v2281
        %v2287 = vmul.f32 %v782, %v2281
        %v2288 = vmul.f32 %v783, %v2281
        %v2289 = vmul.f32 %v784, %v2281
        %v2290 = vmul.f32 %v785, %v2281
        %v2291 = vmul.f32 %v786, %v2281
        %v2292 = vmul.f32 %v787, %v2281
        %v2293 = vmul.f32 %v788, %v2281
        %v2294 = vmul.f32 %v789, %v2281
        %v2295 = vmul.f32 %v790, %v2281
        %v2296 = vmul.f32 %v791, %v2281
        %v2297 = vmul.f32 %v792, %v2281
        %v2298 = vmul.f32 %v793, %v2281
        %v2299 = vmul.f32 %v794, %v2281
        %v2300 = vmul.f32 %v795, %v2281
        %v2301 = vmul.f32 %v796, %v2281
        %v2302 = vmul.f32 %v797, %v2281
        %v2303 = vmul.f32 %v798, %v2281
        %v2304 = vmul.f32 %v799, %v2281
        %v2305 = vmul.f32 %v800, %v2281
        %v2306 = vmul.f32 %v801, %v2281
        %v2307 = vmul.f32 %v802, %v2281
        %v2308 = vmul.f32 %v803, %v2281
        %v2309 = vmul.f32 %v804, %v2281
        %v2310 = vmul.f32 %v805, %v2281
        %v2311 = vmul.f32 %v806, %v2281
        %v2312 = vmul.f32 %v807, %v2281
        %v2313 = vmul.f32 %v808, %v2281
        %v2314 = vmul.f32 %v809, %v2281
        %v2315 = vmul.f32 %v810, %v2281
        %v2316 = vmul.f32 %v811, %v2281
        %v2317 = vmul.f32 %v812, %v2281
        %v2318 = vmul.f32 %v813, %v2281
        %v2319 = vmul.f32 %v814, %v2281
        %v2320 = vmul.f32 %v815, %v2281
        %v2321 = vmul.f32 %v816, %v2281
        %v2322 = vmul.f32 %v817, %v2281
        %v2323 = vmul.f32 %v818, %v2281
        %v2324 = vmul.f32 %v819, %v2281
        %v2325 = vmul.f32 %v820, %v2281
        %v2326 = vmul.f32 %v821, %v2281
        %v2327 = vmul.f32 %v822, %v2281
        %v2328 = vmul.f32 %v823, %v2281
        %v2329 = vmul.f32 %v824, %v2281
        %v2330 = vmul.f32 %v825, %v2281
        %v2379 = vrot.slane %v2283, 2
        %v2380 = vrot.slane %v2284, 2
        %v2381 = vsel %vm1254, %v2379, %v2380
        %v2382 = vrot.slane %v2285, 2
        %v2383 = vsel %vm1254, %v2380, %v2382
        %v2384 = vrot.slane %v2286, 2
        %v2385 = vrot.slane %v2287, 2
        %v2386 = vsel %vm1254, %v2384, %v2385
        %v2387 = vrot.slane %v2288, 2
        %v2388 = vsel %vm1254, %v2385, %v2387
        %v2389 = vrot.slane %v2289, 2
        %v2390 = vrot.slane %v2290, 2
        %v2391 = vsel %vm1254, %v2389, %v2390
        %v2392 = vrot.slane %v2291, 2
        %v2393 = vsel %vm1254, %v2390, %v2392
        %v2394 = vrot.slane %v2292, 2
        %v2395 = vrot.slane %v2293, 2
        %v2396 = vsel %vm1254, %v2394, %v2395
        %v2397 = vrot.slane %v2294, 2
        %v2398 = vsel %vm1254, %v2395, %v2397
        %v2399 = vrot.slane %v2295, 2
        %v2400 = vrot.slane %v2296, 2
        %v2401 = vsel %vm1254, %v2399, %v2400
        %v2402 = vrot.slane %v2297, 2
        %v2403 = vsel %vm1254, %v2400, %v2402
        %v2404 = vrot.slane %v2298, 2
        %v2405 = vrot.slane %v2299, 2
        %v2406 = vsel %vm1254, %v2404, %v2405
        %v2407 = vrot.slane %v2300, 2
        %v2408 = vsel %vm1254, %v2405, %v2407
        %v2409 = vrot.slane %v2301, 2
        %v2410 = vrot.slane %v2302, 2
        %v2411 = vsel %vm1254, %v2409, %v2410
        %v2412 = vrot.slane %v2303, 2
        %v2413 = vsel %vm1254, %v2410, %v2412
        %v2414 = vrot.slane %v2304, 2
        %v2415 = vrot.slane %v2305, 2
        %v2416 = vsel %vm1254, %v2414, %v2415
        %v2417 = vrot.slane %v2306, 2
        %v2418 = vsel %vm1254, %v2415, %v2417
        %v2419 = vrot.slane %v2307, 2
        %v2420 = vrot.slane %v2308, 2
        %v2421 = vsel %vm1254, %v2419, %v2420
        %v2422 = vrot.slane %v2309, 2
        %v2423 = vsel %vm1254, %v2420, %v2422
        %v2424 = vrot.slane %v2310, 2
        %v2425 = vrot.slane %v2311, 2
        %v2426 = vsel %vm1254, %v2424, %v2425
        %v2427 = vrot.slane %v2312, 2
        %v2428 = vsel %vm1254, %v2425, %v2427
        %v2429 = vrot.slane %v2313, 2
        %v2430 = vrot.slane %v2314, 2
        %v2431 = vsel %vm1254, %v2429, %v2430
        %v2432 = vrot.slane %v2315, 2
        %v2433 = vsel %vm1254, %v2430, %v2432
        %v2434 = vrot.slane %v2316, 2
        %v2435 = vrot.slane %v2317, 2
        %v2436 = vsel %vm1254, %v2434, %v2435
        %v2437 = vrot.slane %v2318, 2
        %v2438 = vsel %vm1254, %v2435, %v2437
        %v2439 = vrot.slane %v2319, 2
        %v2440 = vrot.slane %v2320, 2
        %v2441 = vsel %vm1254, %v2439, %v2440
        %v2442 = vrot.slane %v2321, 2
        %v2443 = vsel %vm1254, %v2440, %v2442
        %v2444 = vrot.slane %v2322, 2
        %v2445 = vrot.slane %v2323, 2
        %v2446 = vsel %vm1254, %v2444, %v2445
        %v2447 = vrot.slane %v2324, 2
        %v2448 = vsel %vm1254, %v2445, %v2447
        %v2449 = vrot.slane %v2325, 2
        %v2450 = vrot.slane %v2326, 2
        %v2451 = vsel %vm1254, %v2449, %v2450
        %v2452 = vrot.slane %v2327, 2
        %v2453 = vsel %vm1254, %v2450, %v2452
        %v2454 = vrot.slane %v2328, 2
        %v2455 = vrot.slane %v2329, 2
        %v2456 = vsel %vm1254, %v2454, %v2455
        %v2457 = vrot.slane %v2330, 2
        %v2458 = vsel %vm1254, %v2455, %v2457
        %v2491 = vadd.f32 %v2245, %v2381
        %v2492 = vadd.f32 %v2246, %v2383
        %v2493 = vadd.f32 %v2247, %v2386
        %v2494 = vadd.f32 %v2248, %v2388
        %v2495 = vadd.f32 %v2249, %v2391
        %v2496 = vadd.f32 %v2250, %v2393
        %v2497 = vadd.f32 %v2251, %v2396
        %v2498 = vadd.f32 %v2252, %v2398
        %v2499 = vadd.f32 %v2253, %v2401
        %v2500 = vadd.f32 %v2254, %v2403
        %v2501 = vadd.f32 %v2255, %v2406
        %v2502 = vadd.f32 %v2256, %v2408
        %v2503 = vadd.f32 %v2257, %v2411
        %v2504 = vadd.f32 %v2258, %v2413
        %v2505 = vadd.f32 %v2259, %v2416
        %v2506 = vadd.f32 %v2260, %v2418
        %v2507 = vadd.f32 %v2261, %v2421
        %v2508 = vadd.f32 %v2262, %v2423
        %v2509 = vadd.f32 %v2263, %v2426
        %v2510 = vadd.f32 %v2264, %v2428
        %v2511 = vadd.f32 %v2265, %v2431
        %v2512 = vadd.f32 %v2266, %v2433
        %v2513 = vadd.f32 %v2267, %v2436
        %v2514 = vadd.f32 %v2268, %v2438
        %v2515 = vadd.f32 %v2269, %v2441
        %v2516 = vadd.f32 %v2270, %v2443
        %v2517 = vadd.f32 %v2271, %v2446
        %v2518 = vadd.f32 %v2272, %v2448
        %v2519 = vadd.f32 %v2273, %v2451
        %v2520 = vadd.f32 %v2274, %v2453
        %v2521 = vadd.f32 %v2275, %v2456
        %v2522 = vadd.f32 %v2276, %v2458
        %v2523 = vlaneseq
        %v2524 = vshrl.u32 %v2523, 7
        %v2525 = vsub.s32 2, %v2524
        %v2526 = vrot.slane %v283, %v2525
        %v2527 = vadd.f32 %v2491, %v2526
        %v2528 = vadd.f32 %v2492, %v2526
        %v2529 = vadd.f32 %v2493, %v2526
        %v2530 = vadd.f32 %v2494, %v2526
        %v2531 = vadd.f32 %v2495, %v2526
        %v2532 = vadd.f32 %v2496, %v2526
        %v2533 = vadd.f32 %v2497, %v2526
        %v2534 = vadd.f32 %v2498, %v2526
        %v2535 = vadd.f32 %v2499, %v2526
        %v2536 = vadd.f32 %v2500, %v2526
        %v2537 = vadd.f32 %v2501, %v2526
        %v2538 = vadd.f32 %v2502, %v2526
        %v2539 = vadd.f32 %v2503, %v2526
        %v2540 = vadd.f32 %v2504, %v2526
        %v2541 = vadd.f32 %v2505, %v2526
        %v2542 = vadd.f32 %v2506, %v2526
        %v2543 = vadd.f32 %v2507, %v2526
        %v2544 = vadd.f32 %v2508, %v2526
        %v2545 = vadd.f32 %v2509, %v2526
        %v2546 = vadd.f32 %v2510, %v2526
        %v2547 = vadd.f32 %v2511, %v2526
        %v2548 = vadd.f32 %v2512, %v2526
        %v2549 = vadd.f32 %v2513, %v2526
        %v2550 = vadd.f32 %v2514, %v2526
        %v2551 = vadd.f32 %v2515, %v2526
        %v2552 = vadd.f32 %v2516, %v2526
        %v2553 = vadd.f32 %v2517, %v2526
        %v2554 = vadd.f32 %v2518, %v2526
        %v2555 = vadd.f32 %v2519, %v2526
        %v2556 = vadd.f32 %v2520, %v2526
        %v2557 = vadd.f32 %v2521, %v2526
        %v2558 = vadd.f32 %v2522, %v2526
        %vm2559 = vcmp.gt.f32.partialorder %v2527, 0.0
        %vm2560 = vcmp.gt.f32.partialorder %v2528, 0.0
        %vm2561 = vcmp.gt.f32.partialorder %v2529, 0.0
        %vm2562 = vcmp.gt.f32.partialorder %v2530, 0.0
        %vm2563 = vcmp.gt.f32.partialorder %v2531, 0.0
        %vm2564 = vcmp.gt.f32.partialorder %v2532, 0.0
        %vm2565 = vcmp.gt.f32.partialorder %v2533, 0.0
        %vm2566 = vcmp.gt.f32.partialorder %v2534, 0.0
        %vm2567 = vcmp.gt.f32.partialorder %v2535, 0.0
        %vm2568 = vcmp.gt.f32.partialorder %v2536, 0.0
        %vm2569 = vcmp.gt.f32.partialorder %v2537, 0.0
        %vm2570 = vcmp.gt.f32.partialorder %v2538, 0.0
        %vm2571 = vcmp.gt.f32.partialorder %v2539, 0.0
        %vm2572 = vcmp.gt.f32.partialorder %v2540, 0.0
        %vm2573 = vcmp.gt.f32.partialorder %v2541, 0.0
        %vm2574 = vcmp.gt.f32.partialorder %v2542, 0.0
        %vm2575 = vcmp.gt.f32.partialorder %v2543, 0.0
        %vm2576 = vcmp.gt.f32.partialorder %v2544, 0.0
        %vm2577 = vcmp.gt.f32.partialorder %v2545, 0.0
        %vm2578 = vcmp.gt.f32.partialorder %v2546, 0.0
        %vm2579 = vcmp.gt.f32.partialorder %v2547, 0.0
        %vm2580 = vcmp.gt.f32.partialorder %v2548, 0.0
        %vm2581 = vcmp.gt.f32.partialorder %v2549, 0.0
        %vm2582 = vcmp.gt.f32.partialorder %v2550, 0.0
        %vm2583 = vcmp.gt.f32.partialorder %v2551, 0.0
        %vm2584 = vcmp.gt.f32.partialorder %v2552, 0.0
        %vm2585 = vcmp.gt.f32.partialorder %v2553, 0.0
        %vm2586 = vcmp.gt.f32.partialorder %v2554, 0.0
        %vm2587 = vcmp.gt.f32.partialorder %v2555, 0.0
        %vm2588 = vcmp.gt.f32.partialorder %v2556, 0.0
        %vm2589 = vcmp.gt.f32.partialorder %v2557, 0.0
        %vm2590 = vcmp.gt.f32.partialorder %v2558, 0.0
        %v2591 = vlaneseq
        %v2592 = vshrl.u32 %v2591, 7
        %v2593 = vsub.s32 3, %v2592
        %v2594 = vrot.slane %v283, %v2593
        %v2595 = vmul.f32 %v2527, %v2594
        %v2596 = vmul.f32 %v2528, %v2594
        %v2597 = vmul.f32 %v2529, %v2594
        %v2598 = vmul.f32 %v2530, %v2594
        %v2599 = vmul.f32 %v2531, %v2594
        %v2600 = vmul.f32 %v2532, %v2594
        %v2601 = vmul.f32 %v2533, %v2594
        %v2602 = vmul.f32 %v2534, %v2594
        %v2603 = vmul.f32 %v2535, %v2594
        %v2604 = vmul.f32 %v2536, %v2594
        %v2605 = vmul.f32 %v2537, %v2594
        %v2606 = vmul.f32 %v2538, %v2594
        %v2607 = vmul.f32 %v2539, %v2594
        %v2608 = vmul.f32 %v2540, %v2594
        %v2609 = vmul.f32 %v2541, %v2594
        %v2610 = vmul.f32 %v2542, %v2594
        %v2611 = vmul.f32 %v2543, %v2594
        %v2612 = vmul.f32 %v2544, %v2594
        %v2613 = vmul.f32 %v2545, %v2594
        %v2614 = vmul.f32 %v2546, %v2594
        %v2615 = vmul.f32 %v2547, %v2594
        %v2616 = vmul.f32 %v2548, %v2594
        %v2617 = vmul.f32 %v2549, %v2594
        %v2618 = vmul.f32 %v2550, %v2594
        %v2619 = vmul.f32 %v2551, %v2594
        %v2620 = vmul.f32 %v2552, %v2594
        %v2621 = vmul.f32 %v2553, %v2594
        %v2622 = vmul.f32 %v2554, %v2594
        %v2623 = vmul.f32 %v2555, %v2594
        %v2624 = vmul.f32 %v2556, %v2594
        %v2625 = vmul.f32 %v2557, %v2594
        %v2626 = vmul.f32 %v2558, %v2594
        %v2627 = vsel %vm2559, %v2527, %v2595
        %v2628 = vsel %vm2560, %v2528, %v2596
        %v2629 = vsel %vm2561, %v2529, %v2597
        %v2630 = vsel %vm2562, %v2530, %v2598
        %v2631 = vsel %vm2563, %v2531, %v2599
        %v2632 = vsel %vm2564, %v2532, %v2600
        %v2633 = vsel %vm2565, %v2533, %v2601
        %v2634 = vsel %vm2566, %v2534, %v2602
        %v2635 = vsel %vm2567, %v2535, %v2603
        %v2636 = vsel %vm2568, %v2536, %v2604
        %v2637 = vsel %vm2569, %v2537, %v2605
        %v2638 = vsel %vm2570, %v2538, %v2606
        %v2639 = vsel %vm2571, %v2539, %v2607
        %v2640 = vsel %vm2572, %v2540, %v2608
        %v2641 = vsel %vm2573, %v2541, %v2609
        %v2642 = vsel %vm2574, %v2542, %v2610
        %v2643 = vsel %vm2575, %v2543, %v2611
        %v2644 = vsel %vm2576, %v2544, %v2612
        %v2645 = vsel %vm2577, %v2545, %v2613
        %v2646 = vsel %vm2578, %v2546, %v2614
        %v2647 = vsel %vm2579, %v2547, %v2615
        %v2648 = vsel %vm2580, %v2548, %v2616
        %v2649 = vsel %vm2581, %v2549, %v2617
        %v2650 = vsel %vm2582, %v2550, %v2618
        %v2651 = vsel %vm2583, %v2551, %v2619
        %v2652 = vsel %vm2584, %v2552, %v2620
        %v2653 = vsel %vm2585, %v2553, %v2621
        %v2654 = vsel %vm2586, %v2554, %v2622
        %v2655 = vsel %vm2587, %v2555, %v2623
        %v2656 = vsel %vm2588, %v2556, %v2624
        %v2657 = vsel %vm2589, %v2557, %v2625
        %v2658 = vsel %vm2590, %v2558, %v2626
        %v2659 = vpack.c.bf16 %v2628, %v2627
        %v2660 = vpack.c.bf16 %v2630, %v2629
        %v2661 = vpack.c.bf16 %v2632, %v2631
        %v2662 = vpack.c.bf16 %v2634, %v2633
        %v2663 = vpack.c.bf16 %v2636, %v2635
        %v2664 = vpack.c.bf16 %v2638, %v2637
        %v2665 = vpack.c.bf16 %v2640, %v2639
        %v2666 = vpack.c.bf16 %v2642, %v2641
        %v2667 = vpack.c.bf16 %v2644, %v2643
        %v2668 = vpack.c.bf16 %v2646, %v2645
        %v2669 = vpack.c.bf16 %v2648, %v2647
        %v2670 = vpack.c.bf16 %v2650, %v2649
        %v2671 = vpack.c.bf16 %v2652, %v2651
        %v2672 = vpack.c.bf16 %v2654, %v2653
        %v2673 = vpack.c.bf16 %v2656, %v2655
        %v2674 = vpack.c.bf16 %v2658, %v2657
        %v2675 = vld [vmem:[%s3] sm:$0xf]
        %v2676 = vld [vmem:[%s5] sm:$0x1]
        %v2678 = vlaneseq
        %v2679 = vshrl.u32 %v2678, 7
        %v2680 = vsub.s32 0, %v2679
        %v2681 = vrot.slane %v2676, %v2680
        %v2684 = vsel %vm683, %v2659, 0
        %v2687 = vsel %vm683, %v2660, 0
        %v2690 = vsel %vm683, %v2661, 0
        %v2693 = vsel %vm683, %v2662, 0
        %v2696 = vsel %vm683, %v2663, 0
        %v2699 = vsel %vm683, %v2664, 0
        %v2702 = vsel %vm683, %v2665, 0
        %v2705 = vsel %vm683, %v2666, 0
        %v2708 = vsel %vm683, %v2667, 0
        %v2711 = vsel %vm683, %v2668, 0
        %v2714 = vsel %vm683, %v2669, 0
        %v2717 = vsel %vm683, %v2670, 0
        %v2720 = vsel %vm683, %v2671, 0
        %v2723 = vsel %vm683, %v2672, 0
        %v2726 = vsel %vm683, %v2673, 0
        %v2729 = vsel %vm683, %v2674, 0
        %vm2731 = vcmask 1043456
        %v2733 = vsel %vm2731, %v2675, 0
        %2735 = vmatprep.subr.bf16.mxu0 0
        %2736 = vmatpush1.bf16.msra.mxu0 %v2733
        %2737 = vmatprep.subr.bf16.mxu0 0
        %2738 = vmatpush1.bf16.msra.mxu0 0
        %2739 = vmatprep.subr.bf16.mxu0 0
        %2740 = vmatpush1.bf16.msra.mxu0 0
        %2741 = vmatprep.subr.bf16.mxu0 0
        %2742 = vmatpush1.bf16.msra.mxu0 0
        %2743 = vmatprep.subr.bf16.mxu0 0
        %2744 = vmatpush1.bf16.msra.mxu0 0
        %2745 = vmatprep.subr.bf16.mxu0 0
        %2746 = vmatpush1.bf16.msra.mxu0 0
        %2747 = vmatprep.subr.bf16.mxu0 0
        %2748 = vmatpush1.bf16.msra.mxu0 0
        %2749 = vmatprep.subr.bf16.mxu0 0
        %2750 = vmatpush1.bf16.msra.mxu0 0
        %2751 = vmatprep.subr.bf16.mxu0 0
        %2752 = vmatpush1.bf16.msra.mxu0 0
        %2753 = vmatprep.subr.bf16.mxu0 0
        %2754 = vmatpush1.bf16.msra.mxu0 0
        %2755 = vmatprep.subr.bf16.mxu0 0
        %2756 = vmatpush1.bf16.msra.mxu0 0
        %2757 = vmatprep.subr.bf16.mxu0 0
        %2758 = vmatpush1.bf16.msra.mxu0 0
        %2759 = vmatprep.subr.bf16.mxu0 0
        %2760 = vmatpush1.bf16.msra.mxu0 0
        %2761 = vmatprep.subr.bf16.mxu0 0
        %2762 = vmatpush1.bf16.msra.mxu0 0
        %2763 = vmatprep.subr.bf16.mxu0 0
        %2764 = vmatpush1.bf16.msra.mxu0 0
        %2765 = vmatprep.subr.bf16.mxu0 0
        %2766 = vmatpush1.bf16.msra.mxu0 0
        %2767 = vmatprep.mubr.bf16.mxu0 0
        %2768 = vmatmul.mubr.bf16.gmra.mrb[0].mxu0 %v2684
        %v2769 = vpop.f32.mrb[0].mxu0
        %v2770 = vadd.f32 %v2681, %v2769
        %v2771 = vpop.f32.mrb[0].mxu0
        %v2772 = vpop.f32.mrb[0].mxu0
        %v2773 = vadd.f32 %v2681, %v2772
        %v2774 = vpop.f32.mrb[0].mxu0
        %2775 = vmatprep.mubr.bf16.mxu0 0
        %2776 = vmatmul.mubr.bf16.gmra.mrb[0].mxu0 %v2687
        %v2777 = vpop.f32.mrb[0].mxu0
        %v2778 = vadd.f32 %v2681, %v2777
        %v2779 = vpop.f32.mrb[0].mxu0
        %v2780 = vpop.f32.mrb[0].mxu0
        %v2781 = vadd.f32 %v2681, %v2780
        %v2782 = vpop.f32.mrb[0].mxu0
        %2783 = vmatprep.mubr.bf16.mxu0 0
        %2784 = vmatmul.mubr.bf16.gmra.mrb[0].mxu0 %v2690
        %v2785 = vpop.f32.mrb[0].mxu0
        %v2786 = vadd.f32 %v2681, %v2785
        %v2787 = vpop.f32.mrb[0].mxu0
        %v2788 = vpop.f32.mrb[0].mxu0
        %v2789 = vadd.f32 %v2681, %v2788
        %v2790 = vpop.f32.mrb[0].mxu0
        %2791 = vmatprep.mubr.bf16.mxu0 0
        %2792 = vmatmul.mubr.bf16.gmra.mrb[0].mxu0 %v2693
        %v2793 = vpop.f32.mrb[0].mxu0
        %v2794 = vadd.f32 %v2681, %v2793
        %v2795 = vpop.f32.mrb[0].mxu0
        %v2796 = vpop.f32.mrb[0].mxu0
        %v2797 = vadd.f32 %v2681, %v2796
        %v2798 = vpop.f32.mrb[0].mxu0
        %2799 = vmatprep.mubr.bf16.mxu0 0
        %2800 = vmatmul.mubr.bf16.gmra.mrb[0].mxu0 %v2696
        %v2801 = vpop.f32.mrb[0].mxu0
        %v2802 = vadd.f32 %v2681, %v2801
        %v2803 = vpop.f32.mrb[0].mxu0
        %v2804 = vpop.f32.mrb[0].mxu0
        %v2805 = vadd.f32 %v2681, %v2804
        %v2806 = vpop.f32.mrb[0].mxu0
        %2807 = vmatprep.mubr.bf16.mxu0 0
        %2808 = vmatmul.mubr.bf16.gmra.mrb[0].mxu0 %v2699
        %v2809 = vpop.f32.mrb[0].mxu0
        %v2810 = vadd.f32 %v2681, %v2809
        %v2811 = vpop.f32.mrb[0].mxu0
        %v2812 = vpop.f32.mrb[0].mxu0
        %v2813 = vadd.f32 %v2681, %v2812
        %v2814 = vpop.f32.mrb[0].mxu0
        %2815 = vmatprep.mubr.bf16.mxu0 0
        %2816 = vmatmul.mubr.bf16.gmra.mrb[0].mxu0 %v2702
        %v2817 = vpop.f32.mrb[0].mxu0
        %v2818 = vadd.f32 %v2681, %v2817
        %v2819 = vpop.f32.mrb[0].mxu0
        %v2820 = vpop.f32.mrb[0].mxu0
        %v2821 = vadd.f32 %v2681, %v2820
        %v2822 = vpop.f32.mrb[0].mxu0
        %2823 = vmatprep.mubr.bf16.mxu0 0
        %2824 = vmatmul.mubr.bf16.gmra.mrb[0].mxu0 %v2705
        %v2825 = vpop.f32.mrb[0].mxu0
        %v2826 = vadd.f32 %v2681, %v2825
        %v2827 = vpop.f32.mrb[0].mxu0
        %v2828 = vpop.f32.mrb[0].mxu0
        %v2829 = vadd.f32 %v2681, %v2828
        %v2830 = vpop.f32.mrb[0].mxu0
        %2831 = vmatprep.mubr.bf16.mxu0 0
        %2832 = vmatmul.mubr.bf16.gmra.mrb[0].mxu0 %v2708
        %v2833 = vpop.f32.mrb[0].mxu0
        %v2834 = vadd.f32 %v2681, %v2833
        %v2835 = vpop.f32.mrb[0].mxu0
        %v2836 = vpop.f32.mrb[0].mxu0
        %v2837 = vadd.f32 %v2681, %v2836
        %v2838 = vpop.f32.mrb[0].mxu0
        %2839 = vmatprep.mubr.bf16.mxu0 0
        %2840 = vmatmul.mubr.bf16.gmra.mrb[0].mxu0 %v2711
        %v2841 = vpop.f32.mrb[0].mxu0
        %v2842 = vadd.f32 %v2681, %v2841
        %v2843 = vpop.f32.mrb[0].mxu0
        %v2844 = vpop.f32.mrb[0].mxu0
        %v2845 = vadd.f32 %v2681, %v2844
        %v2846 = vpop.f32.mrb[0].mxu0
        %2847 = vmatprep.mubr.bf16.mxu0 0
        %2848 = vmatmul.mubr.bf16.gmra.mrb[0].mxu0 %v2714
        %v2849 = vpop.f32.mrb[0].mxu0
        %v2850 = vadd.f32 %v2681, %v2849
        %v2851 = vpop.f32.mrb[0].mxu0
        %v2852 = vpop.f32.mrb[0].mxu0
        %v2853 = vadd.f32 %v2681, %v2852
        %v2854 = vpop.f32.mrb[0].mxu0
        %2855 = vmatprep.mubr.bf16.mxu0 0
        %2856 = vmatmul.mubr.bf16.gmra.mrb[0].mxu0 %v2717
        %v2857 = vpop.f32.mrb[0].mxu0
        %v2858 = vadd.f32 %v2681, %v2857
        %v2859 = vpop.f32.mrb[0].mxu0
        %v2860 = vpop.f32.mrb[0].mxu0
        %v2861 = vadd.f32 %v2681, %v2860
        %v2862 = vpop.f32.mrb[0].mxu0
        %2863 = vmatprep.mubr.bf16.mxu0 0
        %2864 = vmatmul.mubr.bf16.gmra.mrb[0].mxu0 %v2720
        %v2865 = vpop.f32.mrb[0].mxu0
        %v2866 = vadd.f32 %v2681, %v2865
        %v2867 = vpop.f32.mrb[0].mxu0
        %v2868 = vpop.f32.mrb[0].mxu0
        %v2869 = vadd.f32 %v2681, %v2868
        %v2870 = vpop.f32.mrb[0].mxu0
        %2871 = vmatprep.mubr.bf16.mxu0 0
        %2872 = vmatmul.mubr.bf16.gmra.mrb[0].mxu0 %v2723
        %v2873 = vpop.f32.mrb[0].mxu0
        %v2874 = vadd.f32 %v2681, %v2873
        %v2875 = vpop.f32.mrb[0].mxu0
        %v2876 = vpop.f32.mrb[0].mxu0
        %v2877 = vadd.f32 %v2681, %v2876
        %v2878 = vpop.f32.mrb[0].mxu0
        %2879 = vmatprep.mubr.bf16.mxu0 0
        %2880 = vmatmul.mubr.bf16.gmra.mrb[0].mxu0 %v2726
        %v2881 = vpop.f32.mrb[0].mxu0
        %v2882 = vadd.f32 %v2681, %v2881
        %v2883 = vpop.f32.mrb[0].mxu0
        %v2884 = vpop.f32.mrb[0].mxu0
        %v2885 = vadd.f32 %v2681, %v2884
        %v2886 = vpop.f32.mrb[0].mxu0
        %2887 = vmatprep.mubr.bf16.mxu0 0
        %2888 = vmatmul.mubr.bf16.gmra.mrb[0].mxu0 %v2729
        %v2889 = vpop.f32.mrb[0].mxu0
        %v2890 = vadd.f32 %v2681, %v2889
        %v2891 = vpop.f32.mrb[0].mxu0
        %v2892 = vpop.f32.mrb[0].mxu0
        %v2893 = vadd.f32 %v2681, %v2892
        %v2894 = vpop.f32.mrb[0].mxu0
        %2895 = vdwg.mxu0
        %v2896 = vunpack.c.l.bf16 %v251
        %v2897 = vunpack.c.l.bf16 %v252
        %v2898 = vunpack.c.l.bf16 %v253
        %v2899 = vunpack.c.l.bf16 %v254
        %v2900 = vunpack.c.l.bf16 %v255
        %v2901 = vunpack.c.l.bf16 %v256
        %v2902 = vunpack.c.l.bf16 %v257
        %v2903 = vunpack.c.l.bf16 %v258
        %v2904 = vunpack.c.l.bf16 %v259
        %v2905 = vunpack.c.l.bf16 %v260
        %v2906 = vunpack.c.l.bf16 %v261
        %v2907 = vunpack.c.l.bf16 %v262
        %v2908 = vunpack.c.l.bf16 %v263
        %v2909 = vunpack.c.l.bf16 %v264
        %v2910 = vunpack.c.l.bf16 %v265
        %v2911 = vunpack.c.l.bf16 %v266
        %v2912 = vunpack.c.l.bf16 %v267
        %v2913 = vunpack.c.l.bf16 %v268
        %v2914 = vunpack.c.l.bf16 %v269
        %v2915 = vunpack.c.l.bf16 %v270
        %v2916 = vunpack.c.l.bf16 %v271
        %v2917 = vunpack.c.l.bf16 %v272
        %v2918 = vunpack.c.l.bf16 %v273
        %v2919 = vunpack.c.l.bf16 %v274
        %v2920 = vunpack.c.l.bf16 %v275
        %v2921 = vunpack.c.l.bf16 %v276
        %v2922 = vunpack.c.l.bf16 %v277
        %v2923 = vunpack.c.l.bf16 %v278
        %v2924 = vunpack.c.l.bf16 %v279
        %v2925 = vunpack.c.l.bf16 %v280
        %v2926 = vunpack.c.l.bf16 %v281
        %v2927 = vunpack.c.l.bf16 %v282
        %v2928 = vadd.f32 %v2770, %v2896
        %v2929 = vadd.f32 %v2773, %v2897
        %v2930 = vadd.f32 %v2778, %v2898
        %v2931 = vadd.f32 %v2781, %v2899
        %v2932 = vadd.f32 %v2786, %v2900
        %v2933 = vadd.f32 %v2789, %v2901
        %v2934 = vadd.f32 %v2794, %v2902
        %v2935 = vadd.f32 %v2797, %v2903
        %v2936 = vadd.f32 %v2802, %v2904
        %v2937 = vadd.f32 %v2805, %v2905
        %v2938 = vadd.f32 %v2810, %v2906
        %v2939 = vadd.f32 %v2813, %v2907
        %v2940 = vadd.f32 %v2818, %v2908
        %v2941 = vadd.f32 %v2821, %v2909
        %v2942 = vadd.f32 %v2826, %v2910
        %v2943 = vadd.f32 %v2829, %v2911
        %v2944 = vadd.f32 %v2834, %v2912
        %v2945 = vadd.f32 %v2837, %v2913
        %v2946 = vadd.f32 %v2842, %v2914
        %v2947 = vadd.f32 %v2845, %v2915
        %v2948 = vadd.f32 %v2850, %v2916
        %v2949 = vadd.f32 %v2853, %v2917
        %v2950 = vadd.f32 %v2858, %v2918
        %v2951 = vadd.f32 %v2861, %v2919
        %v2952 = vadd.f32 %v2866, %v2920
        %v2953 = vadd.f32 %v2869, %v2921
        %v2954 = vadd.f32 %v2874, %v2922
        %v2955 = vadd.f32 %v2877, %v2923
        %v2956 = vadd.f32 %v2882, %v2924
        %v2957 = vadd.f32 %v2885, %v2925
        %v2958 = vadd.f32 %v2890, %v2926
        %v2959 = vadd.f32 %v2893, %v2927
        %2960 = vxpose.xlu0.b32.start [1/16] %v2928, 128
        %2961 = vxpose.xlu0.b32.cont [2/16] %v2929, 128
        %2962 = vxpose.xlu0.b32.cont [3/16] %v2930, 128
        %2963 = vxpose.xlu0.b32.cont [4/16] %v2931, 128
        %2964 = vxpose.xlu0.b32.cont [5/16] %v2932, 128
        %2965 = vxpose.xlu0.b32.cont [6/16] %v2933, 128
        %2966 = vxpose.xlu0.b32.cont [7/16] %v2934, 128
        %2967 = vxpose.xlu0.b32.cont [8/16] %v2935, 128
        %2968 = vxpose.xlu0.b32.cont [9/16] %v2936, 128
        %2969 = vxpose.xlu0.b32.cont [10/16] %v2937, 128
        %2970 = vxpose.xlu0.b32.cont [11/16] %v2938, 128
        %2971 = vxpose.xlu0.b32.cont [12/16] %v2939, 128
        %2972 = vxpose.xlu0.b32.cont [13/16] %v2940, 128
        %2973 = vxpose.xlu0.b32.cont [14/16] %v2941, 128
        %2974 = vxpose.xlu0.b32.cont [15/16] %v2942, 128
        %2975 = vxpose.xlu0.b32.end [16/16] %v2943, 128
        %v2976 = vpop.trf.xlu0
        %v2977 = vpop.trf.xlu0
        %v2978 = vpop.trf.xlu0
        %v2979 = vpop.trf.xlu0
        %v2980 = vpop.trf.xlu0
        %v2981 = vpop.trf.xlu0
        %v2982 = vpop.trf.xlu0
        %v2983 = vpop.trf.xlu0
        %v2984 = vpop.trf.xlu0
        %v2985 = vpop.trf.xlu0
        %v2986 = vpop.trf.xlu0
        %v2987 = vpop.trf.xlu0
        %v2988 = vpop.trf.xlu0
        %v2989 = vpop.trf.xlu0
        %v2990 = vpop.trf.xlu0
        %v2991 = vpop.trf.xlu0
        %2992 = vxpose.xlu0.b32.start [1/16] %v2944, 128
        %2993 = vxpose.xlu0.b32.cont [2/16] %v2945, 128
        %2994 = vxpose.xlu0.b32.cont [3/16] %v2946, 128
        %2995 = vxpose.xlu0.b32.cont [4/16] %v2947, 128
        %2996 = vxpose.xlu0.b32.cont [5/16] %v2948, 128
        %2997 = vxpose.xlu0.b32.cont [6/16] %v2949, 128
        %2998 = vxpose.xlu0.b32.cont [7/16] %v2950, 128
        %2999 = vxpose.xlu0.b32.cont [8/16] %v2951, 128
        %3000 = vxpose.xlu0.b32.cont [9/16] %v2952, 128
        %3001 = vxpose.xlu0.b32.cont [10/16] %v2953, 128
        %3002 = vxpose.xlu0.b32.cont [11/16] %v2954, 128
        %3003 = vxpose.xlu0.b32.cont [12/16] %v2955, 128
        %3004 = vxpose.xlu0.b32.cont [13/16] %v2956, 128
        %3005 = vxpose.xlu0.b32.cont [14/16] %v2957, 128
        %3006 = vxpose.xlu0.b32.cont [15/16] %v2958, 128
        %3007 = vxpose.xlu0.b32.end [16/16] %v2959, 128
        %v3008 = vpop.trf.xlu0
        %v3009 = vpop.trf.xlu0
        %v3010 = vpop.trf.xlu0
        %v3011 = vpop.trf.xlu0
        %v3012 = vpop.trf.xlu0
        %v3013 = vpop.trf.xlu0
        %v3014 = vpop.trf.xlu0
        %v3015 = vpop.trf.xlu0
        %v3016 = vpop.trf.xlu0
        %v3017 = vpop.trf.xlu0
        %v3018 = vpop.trf.xlu0
        %v3019 = vpop.trf.xlu0
        %v3020 = vpop.trf.xlu0
        %v3021 = vpop.trf.xlu0
        %v3022 = vpop.trf.xlu0
        %v3023 = vpop.trf.xlu0
        %v3026 = vcombine.low %v2976, %v3008
        %3028 = vst [vmem:[%s244] sm:$0xff] %v3026
        %s3029 = sand.u32 %s159, 1
        %s3030 = scalar_lea.sflag [#allocation4], %s3029
        %s3031 = sand.u32 %s159, 1
        %s3032 = smul.addr %s3031, 8
        %s3033 = scalar_lea.vmem [#allocation3], %s3032
        // Predicated region
        $region45: #{tpu_custom_call.1} parent=43 // pred_check
          %p3034 = pneg %p169
        $region46: #{tpu_custom_call.1} parent=43 // pred_check_branch
          %3036 = sbr.rel (%p3034) target = $region48
        $region47: #{tpu_custom_call.1} parent=43 // pred_region
          %s3038 = ssub.s32 128, 128
          %3039 = vsyncadd %s3030, %s3038
          %s3040 = smul.addr %s20, 2
          %s3041 = smul.addr %s3040, 64
          %s3042 = scalar_lea.hbm %s6, %s3041
          %s3044 = sshll.u32 %s3033, 4
          %s3045 = int_to_ptr.vmem [resolvable:$true] %s3044
          %3047 = dma.vmem_to_hbm [thread:$0]  %s3045, 128, %s3042, %s3030
        $region48: #{tpu_custom_call.1} parent=43 // pred_fallthru
          _
      $region44: #{tpu_custom_call.1} parent=5 // pred_fallthru
        _
      %p3048 = scmp.le.s32.totalorder 2, %s15
      // Predicated region
      $region49: #{tpu_custom_call.1} parent=5 // pred_check
        %p3049 = pneg %p3048
      $region50: #{tpu_custom_call.1} parent=5 // pred_check_branch
        %3051 = sbr.rel (%p3049) target = $region52
      $region51: #{tpu_custom_call.1} parent=5 // pred_region
        %s3052 = ssub.s32 %s15, 2
        // Predicated region
        $region53: #{tpu_custom_call.1} parent=51 // pred_check
          %p3053 = pneg %p175
        $region54: #{tpu_custom_call.1} parent=51 // pred_check_branch
          %3055 = sbr.rel (%p3053) target = $region56
        $region55: #{tpu_custom_call.1} parent=51 // pred_region
          %s3056 = sand.u32 %s160, 1
          %s3057 = scalar_lea.sflag [#allocation4], %s3056
          %s3058 = sand.u32 %s160, 1
          %s3059 = smul.addr %s3058, 8
          %s3060 = scalar_lea.vmem [#allocation3], %s3059
          %3061 = dma.done %s3057, 128
        $region56: #{tpu_custom_call.1} parent=51 // pred_fallthru
          _
      $region52: #{tpu_custom_call.1} parent=5 // pred_fallthru
        _
    $region6: #{tpu_custom_call.1} parent=1 // loop_footer
      %s19 = sadd.s32 1, %s15
    $region7: #{tpu_custom_call.1} parent=1 // loop_footer_branch
      %14 = sbr.rel target = $region3
    $region8: #{tpu_custom_call.1} parent=1 // loop_exit
      _
    %3062 = vsyncpa [#allocation4], 1
    %s3063 = scalar_lea.sflag [#allocation4], 1
    %3064 = vsyncpa %s3063, 1

</llo_original>
